<compile_context>
chip_gen: v5e
topology: v5e:2x2
jax: 0.10.0
libtpu: 0.0.40
codegen_flags: <defaults>
</compile_context>

<pallas_src>
import jax
import jax.numpy as jnp
from jax import lax
from jax.experimental import pallas as pl
from jax.experimental.pallas import tpu as pltpu


def _pick_tile_h(H: int) -> int:
    """Largest multiple-of-8 divisor of H (capped) so output rows tile evenly."""
    if H % 8 != 0 or H <= 8:
        return H                      # single-tile fallback (block == full dim)
    cap = min(H // 2, 64)
    best = 8
    for cand in range(8, cap + 1, 8):
        if H % cand == 0:
            best = cand
    return best


def _moglk_kernel(x_ref, w_hw_ref, b_hw_ref, w_w_ref, b_w_ref, w_h_ref, b_h_ref,
                  o_ref, win_hw_ref, win_w_ref, win_h_ref):
    """One (batch, row-tile) grid step.

    x_ref      : (C, H, W)            full image (revisited across row tiles)
    w_hw_ref   : (gc, 3, 3)           3x3 depthwise taps
    w_w_ref    : (gc, 1, 11)          1x11 depthwise taps
    w_h_ref    : (gc, 11, 1)          11x1 depthwise taps
    b_*_ref    : (gc, 1, 1)           biases
    o_ref      : (C, tile_h, W)       output row tile
    win_*_ref  : VMEM halo windows (zero outside the image / at tile seams)
    """
    C, _H, W = x_ref.shape
    tile_h = o_ref.shape[1]
    gc = w_hw_ref.shape[0]
    c_id = C - 3 * gc

    t = pl.program_id(1)
    n_tiles = pl.num_programs(1)
    r0 = pl.multiple_of(t * tile_h, tile_h)

    def fill_window(win_ref, ch0, padh, padw):
        """win <- rows [r0-padh, r0+tile_h+padh) x cols [-padw, W+padw) of
        channels [ch0, ch0+gc), zeros outside the image (PyTorch zero pad)."""
        win_ref[...] = jnp.zeros(win_ref.shape, win_ref.dtype)
        win_ref[:, padh:padh + tile_h, padw:padw + W] = (
            x_ref[ch0:ch0 + gc, pl.ds(r0, tile_h), :].astype(jnp.float32))
        if padh > 0:
            @pl.when(t > 0)                         # halo rows from tile above
            def _():
                win_ref[:, 0:padh, padw:padw + W] = (
                    x_ref[ch0:ch0 + gc, pl.ds(r0 - padh, padh), :]
                    .astype(jnp.float32))

            @pl.when(t < n_tiles - 1)               # halo rows from tile below
            def _():
                win_ref[:, padh + tile_h:, padw:padw + W] = (
                    x_ref[ch0:ch0 + gc, pl.ds(r0 + tile_h, padh), :]
                    .astype(jnp.float32))

    # ---- identity channels: straight copy of this row tile ------------------
    if c_id > 0:
        o_ref[0:c_id, :, :] = (
            x_ref[0:c_id, pl.ds(r0, tile_h), :].astype(o_ref.dtype))

    # ---- branch 1: square 3x3 depthwise (padding 1) --------------------------
    c0 = c_id
    fill_window(win_hw_ref, c0, 1, 1)
    w3 = w_hw_ref[...].astype(jnp.float32)                  # (gc, 3, 3)
    acc = win_hw_ref[:, 1:1 + tile_h, 1:1 + W] * w3[:, 1:2, 1:2]   # center tap
    for dh in range(3):
        for dw in range(3):
            if dh == 1 and dw == 1:
                continue
            acc = acc + (win_hw_ref[:, dh:dh + tile_h, dw:dw + W]
                         * w3[:, dh:dh + 1, dw:dw + 1])
    o_ref[c0:c0 + gc, :, :] = (
        acc + b_hw_ref[...].astype(jnp.float32)).astype(o_ref.dtype)

    # ---- branch 2: horizontal band 1x11 depthwise (padding (0, 5)) -----------
    c0 = c_id + gc
    fill_window(win_w_ref, c0, 0, 5)
    w11 = w_w_ref[...].astype(jnp.float32)                   # (gc, 1, 11)
    acc = win_w_ref[:, :, 5:5 + W] * w11[:, :, 5:6]           # center tap
    for dw in range(11):
        if dw == 5:
            continue
        acc = acc + win_w_ref[:, :, dw:dw + W] * w11[:, :, dw:dw + 1]
    o_ref[c0:c0 + gc, :, :] = (
        acc + b_w_ref[...].astype(jnp.float32)).astype(o_ref.dtype)

    # ---- branch 3: vertical band 11x1 depthwise (padding (5, 0)) -------------
    c0 = c_id + 2 * gc
    fill_window(win_h_ref, c0, 5, 0)
    w11v = w_h_ref[...].astype(jnp.float32)                  # (gc, 11, 1)
    acc = win_h_ref[:, 5:5 + tile_h, :] * w11v[:, 5:6, :]     # center tap
    for dh in range(11):
        if dh == 5:
            continue
        acc = acc + win_h_ref[:, dh:dh + tile_h, :] * w11v[:, dh:dh + 1, :]
    o_ref[c0:c0 + gc, :, :] = (
        acc + b_h_ref[...].astype(jnp.float32)).astype(o_ref.dtype)


def moglk_forward(x, w_hw, b_hw, w_w, b_w, w_h, b_h):
    """MogLKDWConv2d forward.

    x    : (N, C, H, W)
    w_hw : (gc, 1, 3, 3)   b_hw : (gc,)
    w_w  : (gc, 1, 1, 11)  b_w  : (gc,)
    w_h  : (gc, 1, 11, 1)  b_h  : (gc,)
    """
    N, C, H, W = x.shape
    gc = w_hw.shape[0]
    c_id = C - 3 * gc
    assert gc >= 1 and c_id >= 0

    tile_h = _pick_tile_h(H)
    n_tiles = H // tile_h

    def w_spec(shape):
        return pl.BlockSpec(shape, lambda n, t: (0,) * len(shape))

    return pl.pallas_call(
        _moglk_kernel,
        out_shape=jax.ShapeDtypeStruct((N, C, H, W), x.dtype),
        grid=(N, n_tiles),
        in_specs=[
            # full image, revisited across row tiles -> one HBM read per image
            pl.BlockSpec((None, C, H, W), lambda n, t: (n, 0, 0, 0)),
            w_spec((gc, 3, 3)),  w_spec((gc, 1, 1)),
            w_spec((gc, 1, 11)), w_spec((gc, 1, 1)),
            w_spec((gc, 11, 1)), w_spec((gc, 1, 1)),
        ],
        out_specs=pl.BlockSpec((None, C, tile_h, W), lambda n, t: (n, 0, t, 0)),
        scratch_shapes=[
            pltpu.VMEM((gc, tile_h + 2, W + 2), jnp.float32),    # 3x3 window
            pltpu.VMEM((gc, tile_h, W + 10), jnp.float32),       # 1x11 window
            pltpu.VMEM((gc, tile_h + 10, W), jnp.float32),       # 11x1 window
        ],
        compiler_params=pltpu.CompilerParams(
            dimension_semantics=("parallel", "parallel"),
            vmem_limit_bytes=32 * 1024 * 1024),
    )(x,
      w_hw[:, 0], b_hw.reshape(gc, 1, 1),
      w_w[:, 0],  b_w.reshape(gc, 1, 1),
      w_h[:, 0],  b_h.reshape(gc, 1, 1))


def moglk_reference(x, w_hw, b_hw, w_w, b_w, w_h, b_h):
    """Pure-JAX reference (lax depthwise convs) matching the PyTorch module."""
    N, C, H, W = x.shape
    gc = w_hw.shape[0]
    c_id = C - 3 * gc

    def dwconv(xx, w, b, pad):
        out = lax.conv_general_dilated(
            xx, w, window_strides=(1, 1), padding=pad,
            dimension_numbers=("NCHW", "OIHW", "NCHW"),
            feature_group_count=gc, precision=lax.Precision.HIGHEST)
        return out + b.reshape(1, gc, 1, 1)

    x_id = x[:, :c_id]
    x_hw = x[:, c_id:c_id + gc]
    x_w = x[:, c_id + gc:c_id + 2 * gc]
    x_h = x[:, c_id + 2 * gc:]
    return jnp.concatenate([
        x_id,
        dwconv(x_hw, w_hw, b_hw, ((1, 1), (1, 1))),
        dwconv(x_w, w_w, b_w, ((0, 0), (5, 5))),
        dwconv(x_h, w_h, b_h, ((5, 5), (0, 0))),
    ], axis=1)


if __name__ == "__main__":
    # in_channel=32 -> gc=4, identity channels=20; spatial 32 -> 2 row tiles
    N, C, H, W = 2, 32, 32, 32
    gc = int(C * 0.125)

    key = jax.random.PRNGKey(0)
    kx, k1, k2, k3, k4, k5, k6 = jax.random.split(key, 7)
    x = jax.random.normal(kx, (N, C, H, W), dtype=jnp.float32)
    w_hw = jax.random.normal(k1, (gc, 1, 3, 3), dtype=jnp.float32) * 0.1
    b_hw = jax.random.normal(k2, (gc,), dtype=jnp.float32) * 0.1
    w_w = jax.random.normal(k3, (gc, 1, 1, 11), dtype=jnp.float32) * 0.1
    b_w = jax.random.normal(k4, (gc,), dtype=jnp.float32) * 0.1
    w_h = jax.random.normal(k5, (gc, 1, 11, 1), dtype=jnp.float32) * 0.1
    b_h = jax.random.normal(k6, (gc,), dtype=jnp.float32) * 0.1

    out = jax.block_until_ready(moglk_forward(x, w_hw, b_hw, w_w, b_w, w_h, b_h))
    ref = jax.block_until_ready(moglk_reference(x, w_hw, b_hw, w_w, b_w, w_h, b_h))

    assert out.shape == (N, C, H, W)
    max_err = float(jnp.max(jnp.abs(out - ref)))
    assert jnp.allclose(out, ref, atol=2e-5, rtol=2e-5), f"mismatch, max_err={max_err}"

    print("KERNEL_OK")
</pallas_src>

<mosaic_0001>
module attributes {stable_mosaic.version = 11 : i64} {
  func.func @_moglk_kernel(%arg0: i32, %arg1: i32, %arg2: memref<1x32x32x32xf32, #tpu.memory_space<vmem>>, %arg3: memref<4x3x3xf32, #tpu.memory_space<vmem>>, %arg4: memref<4x1x1xf32, #tpu.memory_space<vmem>>, %arg5: memref<4x1x11xf32, #tpu.memory_space<vmem>>, %arg6: memref<4x1x1xf32, #tpu.memory_space<vmem>>, %arg7: memref<4x11x1xf32, #tpu.memory_space<vmem>>, %arg8: memref<4x1x1xf32, #tpu.memory_space<vmem>>, %arg9: memref<1x32x16x32xf32, #tpu.memory_space<vmem>>, %arg10: memref<4x18x34xf32, #tpu.memory_space<vmem>>, %arg11: memref<4x16x42xf32, #tpu.memory_space<vmem>>, %arg12: memref<4x26x32xf32, #tpu.memory_space<vmem>>) attributes {dimension_semantics = [#tpu.dimension_semantics<parallel>, #tpu.dimension_semantics<parallel>], iteration_bounds = array<i64: 2, 2>, scalar_prefetch = 0 : i64, scratch_operands = 3 : i64, tpu.core_type = #tpu.core_type<tc>, window_params = [{transform_indices = @transform_0, window_bounds = array<i64: 1, 32, 32, 32>}, {pipeline_mode = #tpu.pipeline_mode<synchronous>, transform_indices = @transform_1, window_bounds = array<i64: 4, 3, 3>}, {pipeline_mode = #tpu.pipeline_mode<synchronous>, transform_indices = @transform_2, window_bounds = array<i64: 4, 1, 1>}, {pipeline_mode = #tpu.pipeline_mode<synchronous>, transform_indices = @transform_3, window_bounds = array<i64: 4, 1, 11>}, {pipeline_mode = #tpu.pipeline_mode<synchronous>, transform_indices = @transform_4, window_bounds = array<i64: 4, 1, 1>}, {pipeline_mode = #tpu.pipeline_mode<synchronous>, transform_indices = @transform_5, window_bounds = array<i64: 4, 11, 1>}, {pipeline_mode = #tpu.pipeline_mode<synchronous>, transform_indices = @transform_6, window_bounds = array<i64: 4, 1, 1>}, {transform_indices = @transform_7, window_bounds = array<i64: 1, 32, 16, 32>}]} {
    %c16_i32 = arith.constant 16 : i32
    %0 = arith.muli %arg1, %c16_i32 : i32
    %1 = tpu.assume_multiple %0, 16 : i32
    %c0 = arith.constant 0 : index
    %c0_0 = arith.constant 0 : index
    %2 = arith.index_cast %1 : i32 to index
    %c0_1 = arith.constant 0 : index
    %3 = vector.load %arg2[%c0, %c0_0, %2, %c0_1] : memref<1x32x32x32xf32, #tpu.memory_space<vmem>>, vector<1x20x16x32xf32>
    %4 = vector.shape_cast %3 : vector<1x20x16x32xf32> to vector<20x16x32xf32>
    %c0_2 = arith.constant 0 : index
    %c0_3 = arith.constant 0 : index
    %c0_4 = arith.constant 0 : index
    %c0_5 = arith.constant 0 : index
    %5 = vector.load %arg9[%c0_2, %c0_3, %c0_4, %c0_5] : memref<1x32x16x32xf32, #tpu.memory_space<vmem>>, vector<1x20x16x32xf32>
    %6 = vector.shape_cast %5 : vector<1x20x16x32xf32> to vector<20x16x32xf32>
    %7 = vector.shape_cast %4 : vector<20x16x32xf32> to vector<1x20x16x32xf32>
    tpu.vector_store %arg9[%c0_2, %c0_3, %c0_4, %c0_5], %7 {strides = array<i32>} : memref<1x32x16x32xf32, #tpu.memory_space<vmem>>, vector<1x20x16x32xf32>,
    %cst = arith.constant 0.000000e+00 : f32
    %8 = vector.broadcast %cst : f32 to vector<4x18x34xf32>
    %c0_6 = arith.constant 0 : index
    %c0_7 = arith.constant 0 : index
    %c0_8 = arith.constant 0 : index
    %9 = vector.load %arg10[%c0_6, %c0_7, %c0_8] : memref<4x18x34xf32, #tpu.memory_space<vmem>>, vector<4x18x34xf32>
    tpu.vector_store %arg10[%c0_6, %c0_7, %c0_8], %8 {strides = array<i32>} : memref<4x18x34xf32, #tpu.memory_space<vmem>>, vector<4x18x34xf32>,
    %c0_9 = arith.constant 0 : index
    %c20 = arith.constant 20 : index
    %10 = arith.index_cast %1 : i32 to index
    %c0_10 = arith.constant 0 : index
    %11 = vector.load %arg2[%c0_9, %c20, %10, %c0_10] : memref<1x32x32x32xf32, #tpu.memory_space<vmem>>, vector<1x4x16x32xf32>
    %12 = vector.shape_cast %11 : vector<1x4x16x32xf32> to vector<4x16x32xf32>
    %c0_11 = arith.constant 0 : index
    %c1 = arith.constant 1 : index
    %c1_12 = arith.constant 1 : index
    %13 = vector.load %arg10[%c0_11, %c1, %c1_12] : memref<4x18x34xf32, #tpu.memory_space<vmem>>, vector<4x16x32xf32>
    tpu.vector_store %arg10[%c0_11, %c1, %c1_12], %12 {strides = array<i32>} : memref<4x18x34xf32, #tpu.memory_space<vmem>>, vector<4x16x32xf32>,
    %c0_i32 = arith.constant 0 : i32
    %14 = arith.cmpi sgt, %arg1, %c0_i32 : i32
    %15 = arith.extui %14 : i1 to i32
    %c0_i32_13 = arith.constant 0 : i32
    %16 = arith.cmpi ne, %15, %c0_i32_13 : i32
    scf.if %16 {
      %c1_i32_151 = arith.constant 1 : i32
      %211 = arith.subi %1, %c1_i32_151 : i32
      %c0_152 = arith.constant 0 : index
      %c20_153 = arith.constant 20 : index
      %212 = arith.index_cast %211 : i32 to index
      %c0_154 = arith.constant 0 : index
      %213 = vector.load %arg2[%c0_152, %c20_153, %212, %c0_154] : memref<1x32x32x32xf32, #tpu.memory_space<vmem>>, vector<1x4x1x32xf32>
      %214 = vector.shape_cast %213 : vector<1x4x1x32xf32> to vector<4x1x32xf32>
      %c0_155 = arith.constant 0 : index
      %c0_156 = arith.constant 0 : index
      %c1_157 = arith.constant 1 : index
      %215 = vector.load %arg10[%c0_155, %c0_156, %c1_157] : memref<4x18x34xf32, #tpu.memory_space<vmem>>, vector<4x1x32xf32>
      tpu.vector_store %arg10[%c0_155, %c0_156, %c1_157], %214 {strides = array<i32>} : memref<4x18x34xf32, #tpu.memory_space<vmem>>, vector<4x1x32xf32>,
    } else {
    }
    %c1_i32 = arith.constant 1 : i32
    %17 = arith.cmpi slt, %arg1, %c1_i32 : i32
    %18 = arith.extui %17 : i1 to i32
    %c0_i32_14 = arith.constant 0 : i32
    %19 = arith.cmpi ne, %18, %c0_i32_14 : i32
    scf.if %19 {
      %c16_i32_151 = arith.constant 16 : i32
      %211 = arith.addi %1, %c16_i32_151 : i32
      %c0_152 = arith.constant 0 : index
      %c20_153 = arith.constant 20 : index
      %212 = arith.index_cast %211 : i32 to index
      %c0_154 = arith.constant 0 : index
      %213 = vector.load %arg2[%c0_152, %c20_153, %212, %c0_154] : memref<1x32x32x32xf32, #tpu.memory_space<vmem>>, vector<1x4x1x32xf32>
      %214 = vector.shape_cast %213 : vector<1x4x1x32xf32> to vector<4x1x32xf32>
      %c0_155 = arith.constant 0 : index
      %c17 = arith.constant 17 : index
      %c1_156 = arith.constant 1 : index
      %215 = vector.load %arg10[%c0_155, %c17, %c1_156] : memref<4x18x34xf32, #tpu.memory_space<vmem>>, vector<4x1x32xf32>
      tpu.vector_store %arg10[%c0_155, %c17, %c1_156], %214 {strides = array<i32>} : memref<4x18x34xf32, #tpu.memory_space<vmem>>, vector<4x1x32xf32>,
    } else {
    }
    %c0_15 = arith.constant 0 : index
    %c0_16 = arith.constant 0 : index
    %c0_17 = arith.constant 0 : index
    %20 = vector.load %arg3[%c0_15, %c0_16, %c0_17] : memref<4x3x3xf32, #tpu.memory_space<vmem>>, vector<4x3x3xf32>
    %c0_18 = arith.constant 0 : index
    %c1_19 = arith.constant 1 : index
    %c1_20 = arith.constant 1 : index
    %21 = vector.load %arg10[%c0_18, %c1_19, %c1_20] : memref<4x18x34xf32, #tpu.memory_space<vmem>>, vector<4x16x32xf32>
    %22 = vector.extract_strided_slice %20 {offsets = [0, 1, 1], sizes = [4, 1, 1], strides = [1, 1, 1]} : vector<4x3x3xf32> to vector<4x1x1xf32>
    %23 = vector.broadcast %22 : vector<4x1x1xf32> to vector<4x16x32xf32>
    %24 = arith.mulf %21, %23 : vector<4x16x32xf32>
    %c0_21 = arith.constant 0 : index
    %c0_22 = arith.constant 0 : index
    %c0_23 = arith.constant 0 : index
    %25 = vector.load %arg10[%c0_21, %c0_22, %c0_23] : memref<4x18x34xf32, #tpu.memory_space<vmem>>, vector<4x16x32xf32>
    %26 = vector.extract_strided_slice %20 {offsets = [0, 0, 0], sizes = [4, 1, 1], strides = [1, 1, 1]} : vector<4x3x3xf32> to vector<4x1x1xf32>
    %27 = vector.broadcast %26 : vector<4x1x1xf32> to vector<4x16x32xf32>
    %28 = arith.mulf %25, %27 : vector<4x16x32xf32>
    %29 = arith.addf %24, %28 : vector<4x16x32xf32>
    %c0_24 = arith.constant 0 : index
    %c0_25 = arith.constant 0 : index
    %c1_26 = arith.constant 1 : index
    %30 = vector.load %arg10[%c0_24, %c0_25, %c1_26] : memref<4x18x34xf32, #tpu.memory_space<vmem>>, vector<4x16x32xf32>
    %31 = vector.extract_strided_slice %20 {offsets = [0, 0, 1], sizes = [4, 1, 1], strides = [1, 1, 1]} : vector<4x3x3xf32> to vector<4x1x1xf32>
    %32 = vector.broadcast %31 : vector<4x1x1xf32> to vector<4x16x32xf32>
    %33 = arith.mulf %30, %32 : vector<4x16x32xf32>
    %34 = arith.addf %29, %33 : vector<4x16x32xf32>
    %c0_27 = arith.constant 0 : index
    %c0_28 = arith.constant 0 : index
    %c2 = arith.constant 2 : index
    %35 = vector.load %arg10[%c0_27, %c0_28, %c2] : memref<4x18x34xf32, #tpu.memory_space<vmem>>, vector<4x16x32xf32>
    %36 = vector.extract_strided_slice %20 {offsets = [0, 0, 2], sizes = [4, 1, 1], strides = [1, 1, 1]} : vector<4x3x3xf32> to vector<4x1x1xf32>
    %37 = vector.broadcast %36 : vector<4x1x1xf32> to vector<4x16x32xf32>
    %38 = arith.mulf %35, %37 : vector<4x16x32xf32>
    %39 = arith.addf %34, %38 : vector<4x16x32xf32>
    %c0_29 = arith.constant 0 : index
    %c1_30 = arith.constant 1 : index
    %c0_31 = arith.constant 0 : index
    %40 = vector.load %arg10[%c0_29, %c1_30, %c0_31] : memref<4x18x34xf32, #tpu.memory_space<vmem>>, vector<4x16x32xf32>
    %41 = vector.extract_strided_slice %20 {offsets = [0, 1, 0], sizes = [4, 1, 1], strides = [1, 1, 1]} : vector<4x3x3xf32> to vector<4x1x1xf32>
    %42 = vector.broadcast %41 : vector<4x1x1xf32> to vector<4x16x32xf32>
    %43 = arith.mulf %40, %42 : vector<4x16x32xf32>
    %44 = arith.addf %39, %43 : vector<4x16x32xf32>
    %c0_32 = arith.constant 0 : index
    %c1_33 = arith.constant 1 : index
    %c2_34 = arith.constant 2 : index
    %45 = vector.load %arg10[%c0_32, %c1_33, %c2_34] : memref<4x18x34xf32, #tpu.memory_space<vmem>>, vector<4x16x32xf32>
    %46 = vector.extract_strided_slice %20 {offsets = [0, 1, 2], sizes = [4, 1, 1], strides = [1, 1, 1]} : vector<4x3x3xf32> to vector<4x1x1xf32>
    %47 = vector.broadcast %46 : vector<4x1x1xf32> to vector<4x16x32xf32>
    %48 = arith.mulf %45, %47 : vector<4x16x32xf32>
    %49 = arith.addf %44, %48 : vector<4x16x32xf32>
    %c0_35 = arith.constant 0 : index
    %c2_36 = arith.constant 2 : index
    %c0_37 = arith.constant 0 : index
    %50 = vector.load %arg10[%c0_35, %c2_36, %c0_37] : memref<4x18x34xf32, #tpu.memory_space<vmem>>, vector<4x16x32xf32>
    %51 = vector.extract_strided_slice %20 {offsets = [0, 2, 0], sizes = [4, 1, 1], strides = [1, 1, 1]} : vector<4x3x3xf32> to vector<4x1x1xf32>
    %52 = vector.broadcast %51 : vector<4x1x1xf32> to vector<4x16x32xf32>
    %53 = arith.mulf %50, %52 : vector<4x16x32xf32>
    %54 = arith.addf %49, %53 : vector<4x16x32xf32>
    %c0_38 = arith.constant 0 : index
    %c2_39 = arith.constant 2 : index
    %c1_40 = arith.constant 1 : index
    %55 = vector.load %arg10[%c0_38, %c2_39, %c1_40] : memref<4x18x34xf32, #tpu.memory_space<vmem>>, vector<4x16x32xf32>
    %56 = vector.extract_strided_slice %20 {offsets = [0, 2, 1], sizes = [4, 1, 1], strides = [1, 1, 1]} : vector<4x3x3xf32> to vector<4x1x1xf32>
    %57 = vector.broadcast %56 : vector<4x1x1xf32> to vector<4x16x32xf32>
    %58 = arith.mulf %55, %57 : vector<4x16x32xf32>
    %59 = arith.addf %54, %58 : vector<4x16x32xf32>
    %c0_41 = arith.constant 0 : index
    %c2_42 = arith.constant 2 : index
    %c2_43 = arith.constant 2 : index
    %60 = vector.load %arg10[%c0_41, %c2_42, %c2_43] : memref<4x18x34xf32, #tpu.memory_space<vmem>>, vector<4x16x32xf32>
    %61 = vector.extract_strided_slice %20 {offsets = [0, 2, 2], sizes = [4, 1, 1], strides = [1, 1, 1]} : vector<4x3x3xf32> to vector<4x1x1xf32>
    %62 = vector.broadcast %61 : vector<4x1x1xf32> to vector<4x16x32xf32>
    %63 = arith.mulf %60, %62 : vector<4x16x32xf32>
    %64 = arith.addf %59, %63 : vector<4x16x32xf32>
    %c0_44 = arith.constant 0 : index
    %c0_45 = arith.constant 0 : index
    %c0_46 = arith.constant 0 : index
    %65 = vector.load %arg4[%c0_44, %c0_45, %c0_46] : memref<4x1x1xf32, #tpu.memory_space<vmem>>, vector<4x1x1xf32>
    %66 = vector.broadcast %65 : vector<4x1x1xf32> to vector<4x16x32xf32>
    %67 = arith.addf %64, %66 : vector<4x16x32xf32>
    %c0_47 = arith.constant 0 : index
    %c20_48 = arith.constant 20 : index
    %c0_49 = arith.constant 0 : index
    %c0_50 = arith.constant 0 : index
    %68 = vector.load %arg9[%c0_47, %c20_48, %c0_49, %c0_50] : memref<1x32x16x32xf32, #tpu.memory_space<vmem>>, vector<1x4x16x32xf32>
    %69 = vector.shape_cast %68 : vector<1x4x16x32xf32> to vector<4x16x32xf32>
    %70 = vector.shape_cast %67 : vector<4x16x32xf32> to vector<1x4x16x32xf32>
    tpu.vector_store %arg9[%c0_47, %c20_48, %c0_49, %c0_50], %70 {strides = array<i32>} : memref<1x32x16x32xf32, #tpu.memory_space<vmem>>, vector<1x4x16x32xf32>,
    %cst_51 = arith.constant 0.000000e+00 : f32
    %71 = vector.broadcast %cst_51 : f32 to vector<4x16x42xf32>
    %c0_52 = arith.constant 0 : index
    %c0_53 = arith.constant 0 : index
    %c0_54 = arith.constant 0 : index
    %72 = vector.load %arg11[%c0_52, %c0_53, %c0_54] : memref<4x16x42xf32, #tpu.memory_space<vmem>>, vector<4x16x42xf32>
    tpu.vector_store %arg11[%c0_52, %c0_53, %c0_54], %71 {strides = array<i32>} : memref<4x16x42xf32, #tpu.memory_space<vmem>>, vector<4x16x42xf32>,
    %c0_55 = arith.constant 0 : index
    %c24 = arith.constant 24 : index
    %73 = arith.index_cast %1 : i32 to index
    %c0_56 = arith.constant 0 : index
    %74 = vector.load %arg2[%c0_55, %c24, %73, %c0_56] : memref<1x32x32x32xf32, #tpu.memory_space<vmem>>, vector<1x4x16x32xf32>
    %75 = vector.shape_cast %74 : vector<1x4x16x32xf32> to vector<4x16x32xf32>
    %c0_57 = arith.constant 0 : index
    %c0_58 = arith.constant 0 : index
    %c5 = arith.constant 5 : index
    %76 = vector.load %arg11[%c0_57, %c0_58, %c5] : memref<4x16x42xf32, #tpu.memory_space<vmem>>, vector<4x16x32xf32>
    tpu.vector_store %arg11[%c0_57, %c0_58, %c5], %75 {strides = array<i32>} : memref<4x16x42xf32, #tpu.memory_space<vmem>>, vector<4x16x32xf32>,
    %c0_59 = arith.constant 0 : index
    %c0_60 = arith.constant 0 : index
    %c0_61 = arith.constant 0 : index
    %77 = vector.load %arg5[%c0_59, %c0_60, %c0_61] : memref<4x1x11xf32, #tpu.memory_space<vmem>>, vector<4x1x11xf32>
    %c0_62 = arith.constant 0 : index
    %c0_63 = arith.constant 0 : index
    %c5_64 = arith.constant 5 : index
    %78 = vector.load %arg11[%c0_62, %c0_63, %c5_64] : memref<4x16x42xf32, #tpu.memory_space<vmem>>, vector<4x16x32xf32>
    %79 = vector.extract_strided_slice %77 {offsets = [0, 0, 5], sizes = [4, 1, 1], strides = [1, 1, 1]} : vector<4x1x11xf32> to vector<4x1x1xf32>
    %80 = vector.broadcast %79 : vector<4x1x1xf32> to vector<4x16x32xf32>
    %81 = arith.mulf %78, %80 : vector<4x16x32xf32>
    %c0_65 = arith.constant 0 : index
    %c0_66 = arith.constant 0 : index
    %c0_67 = arith.constant 0 : index
    %82 = vector.load %arg11[%c0_65, %c0_66, %c0_67] : memref<4x16x42xf32, #tpu.memory_space<vmem>>, vector<4x16x32xf32>
    %83 = vector.extract_strided_slice %77 {offsets = [0, 0, 0], sizes = [4, 1, 1], strides = [1, 1, 1]} : vector<4x1x11xf32> to vector<4x1x1xf32>
    %84 = vector.broadcast %83 : vector<4x1x1xf32> to vector<4x16x32xf32>
    %85 = arith.mulf %82, %84 : vector<4x16x32xf32>
    %86 = arith.addf %81, %85 : vector<4x16x32xf32>
    %c0_68 = arith.constant 0 : index
    %c0_69 = arith.constant 0 : index
    %c1_70 = arith.constant 1 : index
    %87 = vector.load %arg11[%c0_68, %c0_69, %c1_70] : memref<4x16x42xf32, #tpu.memory_space<vmem>>, vector<4x16x32xf32>
    %88 = vector.extract_strided_slice %77 {offsets = [0, 0, 1], sizes = [4, 1, 1], strides = [1, 1, 1]} : vector<4x1x11xf32> to vector<4x1x1xf32>
    %89 = vector.broadcast %88 : vector<4x1x1xf32> to vector<4x16x32xf32>
    %90 = arith.mulf %87, %89 : vector<4x16x32xf32>
    %91 = arith.addf %86, %90 : vector<4x16x32xf32>
    %c0_71 = arith.constant 0 : index
    %c0_72 = arith.constant 0 : index
    %c2_73 = arith.constant 2 : index
    %92 = vector.load %arg11[%c0_71, %c0_72, %c2_73] : memref<4x16x42xf32, #tpu.memory_space<vmem>>, vector<4x16x32xf32>
    %93 = vector.extract_strided_slice %77 {offsets = [0, 0, 2], sizes = [4, 1, 1], strides = [1, 1, 1]} : vector<4x1x11xf32> to vector<4x1x1xf32>
    %94 = vector.broadcast %93 : vector<4x1x1xf32> to vector<4x16x32xf32>
    %95 = arith.mulf %92, %94 : vector<4x16x32xf32>
    %96 = arith.addf %91, %95 : vector<4x16x32xf32>
    %c0_74 = arith.constant 0 : index
    %c0_75 = arith.constant 0 : index
    %c3 = arith.constant 3 : index
    %97 = vector.load %arg11[%c0_74, %c0_75, %c3] : memref<4x16x42xf32, #tpu.memory_space<vmem>>, vector<4x16x32xf32>
    %98 = vector.extract_strided_slice %77 {offsets = [0, 0, 3], sizes = [4, 1, 1], strides = [1, 1, 1]} : vector<4x1x11xf32> to vector<4x1x1xf32>
    %99 = vector.broadcast %98 : vector<4x1x1xf32> to vector<4x16x32xf32>
    %100 = arith.mulf %97, %99 : vector<4x16x32xf32>
    %101 = arith.addf %96, %100 : vector<4x16x32xf32>
    %c0_76 = arith.constant 0 : index
    %c0_77 = arith.constant 0 : index
    %c4 = arith.constant 4 : index
    %102 = vector.load %arg11[%c0_76, %c0_77, %c4] : memref<4x16x42xf32, #tpu.memory_space<vmem>>, vector<4x16x32xf32>
    %103 = vector.extract_strided_slice %77 {offsets = [0, 0, 4], sizes = [4, 1, 1], strides = [1, 1, 1]} : vector<4x1x11xf32> to vector<4x1x1xf32>
    %104 = vector.broadcast %103 : vector<4x1x1xf32> to vector<4x16x32xf32>
    %105 = arith.mulf %102, %104 : vector<4x16x32xf32>
    %106 = arith.addf %101, %105 : vector<4x16x32xf32>
    %c0_78 = arith.constant 0 : index
    %c0_79 = arith.constant 0 : index
    %c6 = arith.constant 6 : index
    %107 = vector.load %arg11[%c0_78, %c0_79, %c6] : memref<4x16x42xf32, #tpu.memory_space<vmem>>, vector<4x16x32xf32>
    %108 = vector.extract_strided_slice %77 {offsets = [0, 0, 6], sizes = [4, 1, 1], strides = [1, 1, 1]} : vector<4x1x11xf32> to vector<4x1x1xf32>
    %109 = vector.broadcast %108 : vector<4x1x1xf32> to vector<4x16x32xf32>
    %110 = arith.mulf %107, %109 : vector<4x16x32xf32>
    %111 = arith.addf %106, %110 : vector<4x16x32xf32>
    %c0_80 = arith.constant 0 : index
    %c0_81 = arith.constant 0 : index
    %c7 = arith.constant 7 : index
    %112 = vector.load %arg11[%c0_80, %c0_81, %c7] : memref<4x16x42xf32, #tpu.memory_space<vmem>>, vector<4x16x32xf32>
    %113 = vector.extract_strided_slice %77 {offsets = [0, 0, 7], sizes = [4, 1, 1], strides = [1, 1, 1]} : vector<4x1x11xf32> to vector<4x1x1xf32>
    %114 = vector.broadcast %113 : vector<4x1x1xf32> to vector<4x16x32xf32>
    %115 = arith.mulf %112, %114 : vector<4x16x32xf32>
    %116 = arith.addf %111, %115 : vector<4x16x32xf32>
    %c0_82 = arith.constant 0 : index
    %c0_83 = arith.constant 0 : index
    %c8 = arith.constant 8 : index
    %117 = vector.load %arg11[%c0_82, %c0_83, %c8] : memref<4x16x42xf32, #tpu.memory_space<vmem>>, vector<4x16x32xf32>
    %118 = vector.extract_strided_slice %77 {offsets = [0, 0, 8], sizes = [4, 1, 1], strides = [1, 1, 1]} : vector<4x1x11xf32> to vector<4x1x1xf32>
    %119 = vector.broadcast %118 : vector<4x1x1xf32> to vector<4x16x32xf32>
    %120 = arith.mulf %117, %119 : vector<4x16x32xf32>
    %121 = arith.addf %116, %120 : vector<4x16x32xf32>
    %c0_84 = arith.constant 0 : index
    %c0_85 = arith.constant 0 : index
    %c9 = arith.constant 9 : index
    %122 = vector.load %arg11[%c0_84, %c0_85, %c9] : memref<4x16x42xf32, #tpu.memory_space<vmem>>, vector<4x16x32xf32>
    %123 = vector.extract_strided_slice %77 {offsets = [0, 0, 9], sizes = [4, 1, 1], strides = [1, 1, 1]} : vector<4x1x11xf32> to vector<4x1x1xf32>
    %124 = vector.broadcast %123 : vector<4x1x1xf32> to vector<4x16x32xf32>
    %125 = arith.mulf %122, %124 : vector<4x16x32xf32>
    %126 = arith.addf %121, %125 : vector<4x16x32xf32>
    %c0_86 = arith.constant 0 : index
    %c0_87 = arith.constant 0 : index
    %c10 = arith.constant 10 : index
    %127 = vector.load %arg11[%c0_86, %c0_87, %c10] : memref<4x16x42xf32, #tpu.memory_space<vmem>>, vector<4x16x32xf32>
    %128 = vector.extract_strided_slice %77 {offsets = [0, 0, 10], sizes = [4, 1, 1], strides = [1, 1, 1]} : vector<4x1x11xf32> to vector<4x1x1xf32>
    %129 = vector.broadcast %128 : vector<4x1x1xf32> to vector<4x16x32xf32>
    %130 = arith.mulf %127, %129 : vector<4x16x32xf32>
    %131 = arith.addf %126, %130 : vector<4x16x32xf32>
    %c0_88 = arith.constant 0 : index
    %c0_89 = arith.constant 0 : index
    %c0_90 = arith.constant 0 : index
    %132 = vector.load %arg6[%c0_88, %c0_89, %c0_90] : memref<4x1x1xf32, #tpu.memory_space<vmem>>, vector<4x1x1xf32>
    %133 = vector.broadcast %132 : vector<4x1x1xf32> to vector<4x16x32xf32>
    %134 = arith.addf %131, %133 : vector<4x16x32xf32>
    %c0_91 = arith.constant 0 : index
    %c24_92 = arith.constant 24 : index
    %c0_93 = arith.constant 0 : index
    %c0_94 = arith.constant 0 : index
    %135 = vector.load %arg9[%c0_91, %c24_92, %c0_93, %c0_94] : memref<1x32x16x32xf32, #tpu.memory_space<vmem>>, vector<1x4x16x32xf32>
    %136 = vector.shape_cast %135 : vector<1x4x16x32xf32> to vector<4x16x32xf32>
    %137 = vector.shape_cast %134 : vector<4x16x32xf32> to vector<1x4x16x32xf32>
    tpu.vector_store %arg9[%c0_91, %c24_92, %c0_93, %c0_94], %137 {strides = array<i32>} : memref<1x32x16x32xf32, #tpu.memory_space<vmem>>, vector<1x4x16x32xf32>,
    %cst_95 = arith.constant 0.000000e+00 : f32
    %138 = vector.broadcast %cst_95 : f32 to vector<4x26x32xf32>
    %c0_96 = arith.constant 0 : index
    %c0_97 = arith.constant 0 : index
    %c0_98 = arith.constant 0 : index
    %139 = vector.load %arg12[%c0_96, %c0_97, %c0_98] : memref<4x26x32xf32, #tpu.memory_space<vmem>>, vector<4x26x32xf32>
    tpu.vector_store %arg12[%c0_96, %c0_97, %c0_98], %138 {strides = array<i32>} : memref<4x26x32xf32, #tpu.memory_space<vmem>>, vector<4x26x32xf32>,
    %c0_99 = arith.constant 0 : index
    %c28 = arith.constant 28 : index
    %140 = arith.index_cast %1 : i32 to index
    %c0_100 = arith.constant 0 : index
    %141 = vector.load %arg2[%c0_99, %c28, %140, %c0_100] : memref<1x32x32x32xf32, #tpu.memory_space<vmem>>, vector<1x4x16x32xf32>
    %142 = vector.shape_cast %141 : vector<1x4x16x32xf32> to vector<4x16x32xf32>
    %c0_101 = arith.constant 0 : index
    %c5_102 = arith.constant 5 : index
    %c0_103 = arith.constant 0 : index
    %143 = vector.load %arg12[%c0_101, %c5_102, %c0_103] : memref<4x26x32xf32, #tpu.memory_space<vmem>>, vector<4x16x32xf32>
    tpu.vector_store %arg12[%c0_101, %c5_102, %c0_103], %142 {strides = array<i32>} : memref<4x26x32xf32, #tpu.memory_space<vmem>>, vector<4x16x32xf32>,
    %c0_i32_104 = arith.constant 0 : i32
    %144 = arith.cmpi sgt, %arg1, %c0_i32_104 : i32
    %145 = arith.extui %144 : i1 to i32
    %c0_i32_105 = arith.constant 0 : i32
    %146 = arith.cmpi ne, %145, %c0_i32_105 : i32
    scf.if %146 {
      %c5_i32 = arith.constant 5 : i32
      %211 = arith.subi %1, %c5_i32 : i32
      %c0_151 = arith.constant 0 : index
      %c28_152 = arith.constant 28 : index
      %212 = arith.index_cast %211 : i32 to index
      %c0_153 = arith.constant 0 : index
      %213 = vector.load %arg2[%c0_151, %c28_152, %212, %c0_153] : memref<1x32x32x32xf32, #tpu.memory_space<vmem>>, vector<1x4x5x32xf32>
      %214 = vector.shape_cast %213 : vector<1x4x5x32xf32> to vector<4x5x32xf32>
      %c0_154 = arith.constant 0 : index
      %c0_155 = arith.constant 0 : index
      %c0_156 = arith.constant 0 : index
      %215 = vector.load %arg12[%c0_154, %c0_155, %c0_156] : memref<4x26x32xf32, #tpu.memory_space<vmem>>, vector<4x5x32xf32>
      tpu.vector_store %arg12[%c0_154, %c0_155, %c0_156], %214 {strides = array<i32>} : memref<4x26x32xf32, #tpu.memory_space<vmem>>, vector<4x5x32xf32>,
    } else {
    }
    %c1_i32_106 = arith.constant 1 : i32
    %147 = arith.cmpi slt, %arg1, %c1_i32_106 : i32
    %148 = arith.extui %147 : i1 to i32
    %c0_i32_107 = arith.constant 0 : i32
    %149 = arith.cmpi ne, %148, %c0_i32_107 : i32
    scf.if %149 {
      %c16_i32_151 = arith.constant 16 : i32
      %211 = arith.addi %1, %c16_i32_151 : i32
      %c0_152 = arith.constant 0 : index
      %c28_153 = arith.constant 28 : index
      %212 = arith.index_cast %211 : i32 to index
      %c0_154 = arith.constant 0 : index
      %213 = vector.load %arg2[%c0_152, %c28_153, %212, %c0_154] : memref<1x32x32x32xf32, #tpu.memory_space<vmem>>, vector<1x4x5x32xf32>
      %214 = vector.shape_cast %213 : vector<1x4x5x32xf32> to vector<4x5x32xf32>
      %c0_155 = arith.constant 0 : index
      %c21 = arith.constant 21 : index
      %c0_156 = arith.constant 0 : index
      %215 = vector.load %arg12[%c0_155, %c21, %c0_156] : memref<4x26x32xf32, #tpu.memory_space<vmem>>, vector<4x5x32xf32>
      tpu.vector_store %arg12[%c0_155, %c21, %c0_156], %214 {strides = array<i32>} : memref<4x26x32xf32, #tpu.memory_space<vmem>>, vector<4x5x32xf32>,
    } else {
    }
    %c0_108 = arith.constant 0 : index
    %c0_109 = arith.constant 0 : index
    %c0_110 = arith.constant 0 : index
    %150 = vector.load %arg7[%c0_108, %c0_109, %c0_110] : memref<4x11x1xf32, #tpu.memory_space<vmem>>, vector<4x11x1xf32>
    %c0_111 = arith.constant 0 : index
    %c5_112 = arith.constant 5 : index
    %c0_113 = arith.constant 0 : index
    %151 = vector.load %arg12[%c0_111, %c5_112, %c0_113] : memref<4x26x32xf32, #tpu.memory_space<vmem>>, vector<4x16x32xf32>
    %152 = vector.extract_strided_slice %150 {offsets = [0, 5, 0], sizes = [4, 1, 1], strides = [1, 1, 1]} : vector<4x11x1xf32> to vector<4x1x1xf32>
    %153 = vector.broadcast %152 : vector<4x1x1xf32> to vector<4x16x32xf32>
    %154 = arith.mulf %151, %153 : vector<4x16x32xf32>
    %c0_114 = arith.constant 0 : index
    %c0_115 = arith.constant 0 : index
    %c0_116 = arith.constant 0 : index
    %155 = vector.load %arg12[%c0_114, %c0_115, %c0_116] : memref<4x26x32xf32, #tpu.memory_space<vmem>>, vector<4x16x32xf32>
    %156 = vector.extract_strided_slice %150 {offsets = [0, 0, 0], sizes = [4, 1, 1], strides = [1, 1, 1]} : vector<4x11x1xf32> to vector<4x1x1xf32>
    %157 = vector.broadcast %156 : vector<4x1x1xf32> to vector<4x16x32xf32>
    %158 = arith.mulf %155, %157 : vector<4x16x32xf32>
    %159 = arith.addf %154, %158 : vector<4x16x32xf32>
    %c0_117 = arith.constant 0 : index
    %c1_118 = arith.constant 1 : index
    %c0_119 = arith.constant 0 : index
    %160 = vector.load %arg12[%c0_117, %c1_118, %c0_119] : memref<4x26x32xf32, #tpu.memory_space<vmem>>, vector<4x16x32xf32>
    %161 = vector.extract_strided_slice %150 {offsets = [0, 1, 0], sizes = [4, 1, 1], strides = [1, 1, 1]} : vector<4x11x1xf32> to vector<4x1x1xf32>
    %162 = vector.broadcast %161 : vector<4x1x1xf32> to vector<4x16x32xf32>
    %163 = arith.mulf %160, %162 : vector<4x16x32xf32>
    %164 = arith.addf %159, %163 : vector<4x16x32xf32>
    %c0_120 = arith.constant 0 : index
    %c2_121 = arith.constant 2 : index
    %c0_122 = arith.constant 0 : index
    %165 = vector.load %arg12[%c0_120, %c2_121, %c0_122] : memref<4x26x32xf32, #tpu.memory_space<vmem>>, vector<4x16x32xf32>
    %166 = vector.extract_strided_slice %150 {offsets = [0, 2, 0], sizes = [4, 1, 1], strides = [1, 1, 1]} : vector<4x11x1xf32> to vector<4x1x1xf32>
    %167 = vector.broadcast %166 : vector<4x1x1xf32> to vector<4x16x32xf32>
    %168 = arith.mulf %165, %167 : vector<4x16x32xf32>
    %169 = arith.addf %164, %168 : vector<4x16x32xf32>
    %c0_123 = arith.constant 0 : index
    %c3_124 = arith.constant 3 : index
    %c0_125 = arith.constant 0 : index
    %170 = vector.load %arg12[%c0_123, %c3_124, %c0_125] : memref<4x26x32xf32, #tpu.memory_space<vmem>>, vector<4x16x32xf32>
    %171 = vector.extract_strided_slice %150 {offsets = [0, 3, 0], sizes = [4, 1, 1], strides = [1, 1, 1]} : vector<4x11x1xf32> to vector<4x1x1xf32>
    %172 = vector.broadcast %171 : vector<4x1x1xf32> to vector<4x16x32xf32>
    %173 = arith.mulf %170, %172 : vector<4x16x32xf32>
    %174 = arith.addf %169, %173 : vector<4x16x32xf32>
    %c0_126 = arith.constant 0 : index
    %c4_127 = arith.constant 4 : index
    %c0_128 = arith.constant 0 : index
    %175 = vector.load %arg12[%c0_126, %c4_127, %c0_128] : memref<4x26x32xf32, #tpu.memory_space<vmem>>, vector<4x16x32xf32>
    %176 = vector.extract_strided_slice %150 {offsets = [0, 4, 0], sizes = [4, 1, 1], strides = [1, 1, 1]} : vector<4x11x1xf32> to vector<4x1x1xf32>
    %177 = vector.broadcast %176 : vector<4x1x1xf32> to vector<4x16x32xf32>
    %178 = arith.mulf %175, %177 : vector<4x16x32xf32>
    %179 = arith.addf %174, %178 : vector<4x16x32xf32>
    %c0_129 = arith.constant 0 : index
    %c6_130 = arith.constant 6 : index
    %c0_131 = arith.constant 0 : index
    %180 = vector.load %arg12[%c0_129, %c6_130, %c0_131] : memref<4x26x32xf32, #tpu.memory_space<vmem>>, vector<4x16x32xf32>
    %181 = vector.extract_strided_slice %150 {offsets = [0, 6, 0], sizes = [4, 1, 1], strides = [1, 1, 1]} : vector<4x11x1xf32> to vector<4x1x1xf32>
    %182 = vector.broadcast %181 : vector<4x1x1xf32> to vector<4x16x32xf32>
    %183 = arith.mulf %180, %182 : vector<4x16x32xf32>
    %184 = arith.addf %179, %183 : vector<4x16x32xf32>
    %c0_132 = arith.constant 0 : index
    %c7_133 = arith.constant 7 : index
    %c0_134 = arith.constant 0 : index
    %185 = vector.load %arg12[%c0_132, %c7_133, %c0_134] : memref<4x26x32xf32, #tpu.memory_space<vmem>>, vector<4x16x32xf32>
    %186 = vector.extract_strided_slice %150 {offsets = [0, 7, 0], sizes = [4, 1, 1], strides = [1, 1, 1]} : vector<4x11x1xf32> to vector<4x1x1xf32>
    %187 = vector.broadcast %186 : vector<4x1x1xf32> to vector<4x16x32xf32>
    %188 = arith.mulf %185, %187 : vector<4x16x32xf32>
    %189 = arith.addf %184, %188 : vector<4x16x32xf32>
    %c0_135 = arith.constant 0 : index
    %c8_136 = arith.constant 8 : index
    %c0_137 = arith.constant 0 : index
    %190 = vector.load %arg12[%c0_135, %c8_136, %c0_137] : memref<4x26x32xf32, #tpu.memory_space<vmem>>, vector<4x16x32xf32>
    %191 = vector.extract_strided_slice %150 {offsets = [0, 8, 0], sizes = [4, 1, 1], strides = [1, 1, 1]} : vector<4x11x1xf32> to vector<4x1x1xf32>
    %192 = vector.broadcast %191 : vector<4x1x1xf32> to vector<4x16x32xf32>
    %193 = arith.mulf %190, %192 : vector<4x16x32xf32>
    %194 = arith.addf %189, %193 : vector<4x16x32xf32>
    %c0_138 = arith.constant 0 : index
    %c9_139 = arith.constant 9 : index
    %c0_140 = arith.constant 0 : index
    %195 = vector.load %arg12[%c0_138, %c9_139, %c0_140] : memref<4x26x32xf32, #tpu.memory_space<vmem>>, vector<4x16x32xf32>
    %196 = vector.extract_strided_slice %150 {offsets = [0, 9, 0], sizes = [4, 1, 1], strides = [1, 1, 1]} : vector<4x11x1xf32> to vector<4x1x1xf32>
    %197 = vector.broadcast %196 : vector<4x1x1xf32> to vector<4x16x32xf32>
    %198 = arith.mulf %195, %197 : vector<4x16x32xf32>
    %199 = arith.addf %194, %198 : vector<4x16x32xf32>
    %c0_141 = arith.constant 0 : index
    %c10_142 = arith.constant 10 : index
    %c0_143 = arith.constant 0 : index
    %200 = vector.load %arg12[%c0_141, %c10_142, %c0_143] : memref<4x26x32xf32, #tpu.memory_space<vmem>>, vector<4x16x32xf32>
    %201 = vector.extract_strided_slice %150 {offsets = [0, 10, 0], sizes = [4, 1, 1], strides = [1, 1, 1]} : vector<4x11x1xf32> to vector<4x1x1xf32>
    %202 = vector.broadcast %201 : vector<4x1x1xf32> to vector<4x16x32xf32>
    %203 = arith.mulf %200, %202 : vector<4x16x32xf32>
    %204 = arith.addf %199, %203 : vector<4x16x32xf32>
    %c0_144 = arith.constant 0 : index
    %c0_145 = arith.constant 0 : index
    %c0_146 = arith.constant 0 : index
    %205 = vector.load %arg8[%c0_144, %c0_145, %c0_146] : memref<4x1x1xf32, #tpu.memory_space<vmem>>, vector<4x1x1xf32>
    %206 = vector.broadcast %205 : vector<4x1x1xf32> to vector<4x16x32xf32>
    %207 = arith.addf %204, %206 : vector<4x16x32xf32>
    %c0_147 = arith.constant 0 : index
    %c28_148 = arith.constant 28 : index
    %c0_149 = arith.constant 0 : index
    %c0_150 = arith.constant 0 : index
    %208 = vector.load %arg9[%c0_147, %c28_148, %c0_149, %c0_150] : memref<1x32x16x32xf32, #tpu.memory_space<vmem>>, vector<1x4x16x32xf32>
    %209 = vector.shape_cast %208 : vector<1x4x16x32xf32> to vector<4x16x32xf32>
    %210 = vector.shape_cast %207 : vector<4x16x32xf32> to vector<1x4x16x32xf32>
    tpu.vector_store %arg9[%c0_147, %c28_148, %c0_149, %c0_150], %210 {strides = array<i32>} : memref<1x32x16x32xf32, #tpu.memory_space<vmem>>, vector<1x4x16x32xf32>,
    return
  }
  func.func @transform_0(%arg0: i32, %arg1: i32) -> (i32, i32, i32, i32) {
    %c0_i32 = arith.constant 0 : i32
    %c0_i32_0 = arith.constant 0 : i32
    %c0_i32_1 = arith.constant 0 : i32
    %c0_i32_2 = arith.constant 0 : i32
    return %arg0, %c0_i32, %c0_i32_0, %c0_i32_1 : i32, i32, i32, i32
  }
  func.func @transform_1(%arg0: i32, %arg1: i32) -> (i32, i32, i32) {
    %c0_i32 = arith.constant 0 : i32
    %c0_i32_0 = arith.constant 0 : i32
    %c0_i32_1 = arith.constant 0 : i32
    %c0_i32_2 = arith.constant 0 : i32
    return %c0_i32, %c0_i32_0, %c0_i32_1 : i32, i32, i32
  }
  func.func @transform_2(%arg0: i32, %arg1: i32) -> (i32, i32, i32) {
    %c0_i32 = arith.constant 0 : i32
    %c0_i32_0 = arith.constant 0 : i32
    %c0_i32_1 = arith.constant 0 : i32
    %c0_i32_2 = arith.constant 0 : i32
    return %c0_i32, %c0_i32_0, %c0_i32_1 : i32, i32, i32
  }
  func.func @transform_3(%arg0: i32, %arg1: i32) -> (i32, i32, i32) {
    %c0_i32 = arith.constant 0 : i32
    %c0_i32_0 = arith.constant 0 : i32
    %c0_i32_1 = arith.constant 0 : i32
    %c0_i32_2 = arith.constant 0 : i32
    return %c0_i32, %c0_i32_0, %c0_i32_1 : i32, i32, i32
  }
  func.func @transform_4(%arg0: i32, %arg1: i32) -> (i32, i32, i32) {
    %c0_i32 = arith.constant 0 : i32
    %c0_i32_0 = arith.constant 0 : i32
    %c0_i32_1 = arith.constant 0 : i32
    %c0_i32_2 = arith.constant 0 : i32
    return %c0_i32, %c0_i32_0, %c0_i32_1 : i32, i32, i32
  }
  func.func @transform_5(%arg0: i32, %arg1: i32) -> (i32, i32, i32) {
    %c0_i32 = arith.constant 0 : i32
    %c0_i32_0 = arith.constant 0 : i32
    %c0_i32_1 = arith.constant 0 : i32
    %c0_i32_2 = arith.constant 0 : i32
    return %c0_i32, %c0_i32_0, %c0_i32_1 : i32, i32, i32
  }
  func.func @transform_6(%arg0: i32, %arg1: i32) -> (i32, i32, i32) {
    %c0_i32 = arith.constant 0 : i32
    %c0_i32_0 = arith.constant 0 : i32
    %c0_i32_1 = arith.constant 0 : i32
    %c0_i32_2 = arith.constant 0 : i32
    return %c0_i32, %c0_i32_0, %c0_i32_1 : i32, i32, i32
  }
  func.func @transform_7(%arg0: i32, %arg1: i32) -> (i32, i32, i32, i32) {
    %c0_i32 = arith.constant 0 : i32
    %c0_i32_0 = arith.constant 0 : i32
    %c0_i32_1 = arith.constant 0 : i32
    return %arg0, %c0_i32, %arg1, %c0_i32_0 : i32, i32, i32, i32
  }
}

</mosaic_0001>

<llo_original>
// kernel: tpu_custom_call.1
$region0: #{tpu_custom_call.1}
  #allocation0 [shape = 'u32[]', space=smem, size = 0x4, offset = 0x4, fixed_abs, tag = 'smem constant byte address 0x4 - core index']
  #allocation1 [shape = 'u32[72,128]{1,0:T(1,128)}', space=vmem, size = 0x9000, scoped, tag = 'internal scratch']
  #allocation2 [shape = 'f32[4,18,34]{2,1,0:T(8,128)}', space=vmem, size = 0xc000, scoped, tag = 'scratch operand']
  #allocation3 [shape = 'f32[4,16,42]{2,1,0:T(8,128)}', space=vmem, size = 0x8000, scoped, tag = 'scratch operand']
  #allocation4 [shape = 'f32[4,26,32]{2,1,0:T(8,128)}', space=vmem, size = 0x10000, scoped, tag = 'scratch operand']
  #allocation9 [shape = 's32[]', space=sflag, size = 0x4, offset = 0, fixed_abs, tag = 'sflag constant byte address 0x0 - dummy sync flag']
  %s0 = inlined_call_operand.hbm [shape: f32[2,32,32,32], index: 0, kind: input, shape index: {}]
  %s1 = inlined_call_operand.vmem [shape: f32[4,3,3], index: 1, kind: input, shape index: {}]
  %s2 = inlined_call_operand.vmem [shape: f32[4,1,1], index: 2, kind: input, shape index: {}]
  %s3 = inlined_call_operand.vmem [shape: f32[4,1,11], index: 3, kind: input, shape index: {}]
  %s4 = inlined_call_operand.vmem [shape: f32[4,1,1], index: 4, kind: input, shape index: {}]
  %s5 = inlined_call_operand.vmem [shape: f32[4,11,1], index: 5, kind: input, shape index: {}]
  %s6 = inlined_call_operand.vmem [shape: f32[4,1,1], index: 6, kind: input, shape index: {}]
  %s7 = inlined_call_operand.hbm [shape: f32[2,32,32,32], index: 7, kind: output, shape index: {}]
  %s8 = sld [smem:[#allocation0]]
  $region81: #{tpu_custom_call.1} parent=0
    _
  %s10 = ssub.s32 1, %s8
  %s11 = scalar_select 0, %s10, %s8
  $region1: #{tpu_custom_call.1} parent=0
    #allocation5 [shape = 'u8[1048576]{0}', space=vmem, size = 0x100000, scoped, tag = 'input window, operand 0']
    #allocation6 [shape = 's32[2]{0}', space=sflag, size = 0x8, scoped, tag = 'scoped memory for tpu_custom_call.1']
    #allocation7 [shape = 's32[2]{0}', space=sflag, size = 0x8, scoped, tag = 'scoped memory for tpu_custom_call.1']
    #allocation8 [shape = 'u8[524288]{0}', space=vmem, size = 0x80000, scoped, tag = 'output window, operand 0']
    %12 = vsyncpa [#allocation6], 0
    %s13 = scalar_lea.sflag [#allocation6], 1
    %14 = vsyncpa %s13, 0
    %15 = vsyncpa [#allocation7], 0
    %s16 = scalar_lea.sflag [#allocation7], 1
    %17 = vsyncpa %s16, 0
    loop: start=0, step=1, limit=6
    $region2: #{tpu_custom_call.1} parent=1 // loop_pre_header
      _
    $region3: #{tpu_custom_call.1} parent=1 // loop_header
      %s19 = sphi 0, %s23
      %p20 = scmp.ge.s32.totalorder %s19, 6
      %s26 = sphi 0, %s38
      %s27 = sphi 0, %s34
      %s28 = sphi 0, %s26
      %s29 = sphi 0, %s27
      %s30 = sphi 0, %s28
      %s31 = sphi 0, %s29
      %s41 = sphi 0, %s43
      %s44 = sphi 0, %s41
      %s45 = sphi 0, %s44
      %s61 = sphi 0, %s45
      %s65 = sphi 0, %s65
      %s67 = sphi 0, %s65
      %s68 = sphi 0, %s67
      %s82 = sphi 0, %s68
      %s86 = sphi 0, %s86
      %s88 = sphi 0, %s86
      %s89 = sphi 0, %s88
      %s103 = sphi 0, %s89
      %s107 = sphi 0, %s107
      %s109 = sphi 0, %s107
      %s110 = sphi 0, %s109
      %s124 = sphi 0, %s110
      %s128 = sphi 0, %s128
      %s130 = sphi 0, %s128
      %s131 = sphi 0, %s130
      %s145 = sphi 0, %s131
      %s149 = sphi 0, %s149
      %s151 = sphi 0, %s149
      %s152 = sphi 0, %s151
      %s166 = sphi 0, %s152
      %s170 = sphi 0, %s170
      %s172 = sphi 0, %s170
      %s173 = sphi 0, %s172
      %s187 = sphi 0, %s173
      %s195 = sphi 0, %s197
      %s198 = sphi 0, %s195
      %s199 = sphi 0, %s198
      %s215 = sphi 0, %s199
    $region4: #{tpu_custom_call.1} parent=1 // loop_header_branch
      %22 = sbr.rel (%p20) target = $region8
    $region5: #{tpu_custom_call.1} parent=1 // loop_body
      %s24 = ssub.s32 %s19, 1
      %s25 = ssub.s32 %s19, 2
      %s32 = sadd.s32 1, %s27
      %p33 = scmp.ge.s32.totalorder %s32, 2
      %s34 = scalar_select %p33, 0, %s32
      %s35 = sadd.s32 1, %s26
      %s36 = scalar_select %p33, %s35, %s26
      %p37 = scmp.ge.s32.totalorder %s36, 2
      %s38 = scalar_select %p37, 0, %s36
      %s39 = ssub.s32 %s26, %s38
      %p40 = scmp.eq.s32.totalorder %s39, 0
      %s42 = sadd.s32 %s41, 1
      %s43 = scalar_select %p40, %s41, %s42
      %p46 = pneg %p40
      %p47 = scmp.eq.s32.totalorder %s19, 3
      %p48 = por %p46, %p47
      %p49 = scmp.ne.s32.totalorder %s41, %s44
      %p50 = scmp.eq.s32.totalorder %s19, 0
      %p51 = por %p49, %p50
      %p52 = scmp.ne.s32.totalorder %s41, %s44
      %p53 = scmp.eq.s32.totalorder %s24, 3
      %p54 = por %p52, %p53
      %p55 = scmp.ne.s32.totalorder %s44, %s45
      %p56 = scmp.eq.s32.totalorder %s24, 0
      %p57 = por %p55, %p56
      %p58 = scmp.ne.s32.totalorder %s44, %s45
      %p59 = scmp.eq.s32.totalorder %s25, 3
      %p60 = por %p58, %p59
      %p62 = scmp.ne.s32.totalorder %s45, %s61
      %p63 = scmp.eq.s32.totalorder %s25, 0
      %p64 = por %p62, %p63
      %s66 = sadd.s32 %s65, 1
      %p69 = scmp.eq.s32.totalorder %s19, 3
      %p70 = scmp.ne.s32.totalorder %s65, %s67
      %p71 = scmp.eq.s32.totalorder %s19, 0
      %p72 = por %p70, %p71
      %p73 = scmp.ne.s32.totalorder %s65, %s67
      %p74 = scmp.eq.s32.totalorder %s24, 3
      %p75 = por %p73, %p74
      %p76 = scmp.ne.s32.totalorder %s67, %s68
      %p77 = scmp.eq.s32.totalorder %s24, 0
      %p78 = por %p76, %p77
      %p79 = scmp.ne.s32.totalorder %s67, %s68
      %p80 = scmp.eq.s32.totalorder %s25, 3
      %p81 = por %p79, %p80
      %p83 = scmp.ne.s32.totalorder %s68, %s82
      %p84 = scmp.eq.s32.totalorder %s25, 0
      %p85 = por %p83, %p84
      %s87 = sadd.s32 %s86, 1
      %p90 = scmp.eq.s32.totalorder %s19, 3
      %p91 = scmp.ne.s32.totalorder %s86, %s88
      %p92 = scmp.eq.s32.totalorder %s19, 0
      %p93 = por %p91, %p92
      %p94 = scmp.ne.s32.totalorder %s86, %s88
      %p95 = scmp.eq.s32.totalorder %s24, 3
      %p96 = por %p94, %p95
      %p97 = scmp.ne.s32.totalorder %s88, %s89
      %p98 = scmp.eq.s32.totalorder %s24, 0
      %p99 = por %p97, %p98
      %p100 = scmp.ne.s32.totalorder %s88, %s89
      %p101 = scmp.eq.s32.totalorder %s25, 3
      %p102 = por %p100, %p101
      %p104 = scmp.ne.s32.totalorder %s89, %s103
      %p105 = scmp.eq.s32.totalorder %s25, 0
      %p106 = por %p104, %p105
      %s108 = sadd.s32 %s107, 1
      %p111 = scmp.eq.s32.totalorder %s19, 3
      %p112 = scmp.ne.s32.totalorder %s107, %s109
      %p113 = scmp.eq.s32.totalorder %s19, 0
      %p114 = por %p112, %p113
      %p115 = scmp.ne.s32.totalorder %s107, %s109
      %p116 = scmp.eq.s32.totalorder %s24, 3
      %p117 = por %p115, %p116
      %p118 = scmp.ne.s32.totalorder %s109, %s110
      %p119 = scmp.eq.s32.totalorder %s24, 0
      %p120 = por %p118, %p119
      %p121 = scmp.ne.s32.totalorder %s109, %s110
      %p122 = scmp.eq.s32.totalorder %s25, 3
      %p123 = por %p121, %p122
      %p125 = scmp.ne.s32.totalorder %s110, %s124
      %p126 = scmp.eq.s32.totalorder %s25, 0
      %p127 = por %p125, %p126
      %s129 = sadd.s32 %s128, 1
      %p132 = scmp.eq.s32.totalorder %s19, 3
      %p133 = scmp.ne.s32.totalorder %s128, %s130
      %p134 = scmp.eq.s32.totalorder %s19, 0
      %p135 = por %p133, %p134
      %p136 = scmp.ne.s32.totalorder %s128, %s130
      %p137 = scmp.eq.s32.totalorder %s24, 3
      %p138 = por %p136, %p137
      %p139 = scmp.ne.s32.totalorder %s130, %s131
      %p140 = scmp.eq.s32.totalorder %s24, 0
      %p141 = por %p139, %p140
      %p142 = scmp.ne.s32.totalorder %s130, %s131
      %p143 = scmp.eq.s32.totalorder %s25, 3
      %p144 = por %p142, %p143
      %p146 = scmp.ne.s32.totalorder %s131, %s145
      %p147 = scmp.eq.s32.totalorder %s25, 0
      %p148 = por %p146, %p147
      %s150 = sadd.s32 %s149, 1
      %p153 = scmp.eq.s32.totalorder %s19, 3
      %p154 = scmp.ne.s32.totalorder %s149, %s151
      %p155 = scmp.eq.s32.totalorder %s19, 0
      %p156 = por %p154, %p155
      %p157 = scmp.ne.s32.totalorder %s149, %s151
      %p158 = scmp.eq.s32.totalorder %s24, 3
      %p159 = por %p157, %p158
      %p160 = scmp.ne.s32.totalorder %s151, %s152
      %p161 = scmp.eq.s32.totalorder %s24, 0
      %p162 = por %p160, %p161
      %p163 = scmp.ne.s32.totalorder %s151, %s152
      %p164 = scmp.eq.s32.totalorder %s25, 3
      %p165 = por %p163, %p164
      %p167 = scmp.ne.s32.totalorder %s152, %s166
      %p168 = scmp.eq.s32.totalorder %s25, 0
      %p169 = por %p167, %p168
      %s171 = sadd.s32 %s170, 1
      %p174 = scmp.eq.s32.totalorder %s19, 3
      %p175 = scmp.ne.s32.totalorder %s170, %s172
      %p176 = scmp.eq.s32.totalorder %s19, 0
      %p177 = por %p175, %p176
      %p178 = scmp.ne.s32.totalorder %s170, %s172
      %p179 = scmp.eq.s32.totalorder %s24, 3
      %p180 = por %p178, %p179
      %p181 = scmp.ne.s32.totalorder %s172, %s173
      %p182 = scmp.eq.s32.totalorder %s24, 0
      %p183 = por %p181, %p182
      %p184 = scmp.ne.s32.totalorder %s172, %s173
      %p185 = scmp.eq.s32.totalorder %s25, 3
      %p186 = por %p184, %p185
      %p188 = scmp.ne.s32.totalorder %s173, %s187
      %p189 = scmp.eq.s32.totalorder %s25, 0
      %p190 = por %p188, %p189
      %s191 = ssub.s32 %s26, %s38
      %s192 = ssub.s32 %s27, %s34
      %s193 = sor.u32 %s191, %s192
      %p194 = scmp.eq.s32.totalorder %s193, 0
      %s196 = sadd.s32 %s195, 1
      %s197 = scalar_select %p194, %s195, %s196
      %p200 = pneg %p194
      %p201 = scmp.eq.s32.totalorder %s19, 3
      %p202 = por %p200, %p201
      %p203 = scmp.ne.s32.totalorder %s195, %s198
      %p204 = scmp.eq.s32.totalorder %s19, 0
      %p205 = por %p203, %p204
      %p206 = scmp.ne.s32.totalorder %s195, %s198
      %p207 = scmp.eq.s32.totalorder %s24, 3
      %p208 = por %p206, %p207
      %p209 = scmp.ne.s32.totalorder %s198, %s199
      %p210 = scmp.eq.s32.totalorder %s24, 0
      %p211 = por %p209, %p210
      %p212 = scmp.ne.s32.totalorder %s198, %s199
      %p213 = scmp.eq.s32.totalorder %s25, 3
      %p214 = por %p212, %p213
      %p216 = scmp.ne.s32.totalorder %s199, %s215
      %p217 = scmp.eq.s32.totalorder %s25, 0
      %p218 = por %p216, %p217
      %p219 = scmp.le.s32.totalorder 1, %s19
      %p220 = scmp.lt.s32.totalorder %s19, 5
      %p221 = pnand %p219, %p220
      %p222 = pneg %p221
      // Predicated region
      $region9: #{tpu_custom_call.1} parent=5 // pred_check
        _
      $region10: #{tpu_custom_call.1} parent=5 // pred_check_branch
        %224 = sbr.rel (%p221) target = $region12
      $region11: #{tpu_custom_call.1} parent=5 // pred_region
        %s225 = ssub.s32 %s19, 1
        // Predicated region
        $region13: #{tpu_custom_call.1} parent=11 // pred_check
          %p226 = pneg %p78
        $region14: #{tpu_custom_call.1} parent=11 // pred_check_branch
          %228 = sbr.rel (%p226) target = $region16
        $region15: #{tpu_custom_call.1} parent=11 // pred_region
          _
        $region16: #{tpu_custom_call.1} parent=11 // pred_fallthru
          _
        // Predicated region
        $region17: #{tpu_custom_call.1} parent=11 // pred_check
          %p229 = pneg %p99
        $region18: #{tpu_custom_call.1} parent=11 // pred_check_branch
          %231 = sbr.rel (%p229) target = $region20
        $region19: #{tpu_custom_call.1} parent=11 // pred_region
          _
        $region20: #{tpu_custom_call.1} parent=11 // pred_fallthru
          _
        // Predicated region
        $region21: #{tpu_custom_call.1} parent=11 // pred_check
          %p232 = pneg %p120
        $region22: #{tpu_custom_call.1} parent=11 // pred_check_branch
          %234 = sbr.rel (%p232) target = $region24
        $region23: #{tpu_custom_call.1} parent=11 // pred_region
          _
        $region24: #{tpu_custom_call.1} parent=11 // pred_fallthru
          _
        // Predicated region
        $region25: #{tpu_custom_call.1} parent=11 // pred_check
          %p235 = pneg %p141
        $region26: #{tpu_custom_call.1} parent=11 // pred_check_branch
          %237 = sbr.rel (%p235) target = $region28
        $region27: #{tpu_custom_call.1} parent=11 // pred_region
          _
        $region28: #{tpu_custom_call.1} parent=11 // pred_fallthru
          _
        // Predicated region
        $region29: #{tpu_custom_call.1} parent=11 // pred_check
          %p238 = pneg %p162
        $region30: #{tpu_custom_call.1} parent=11 // pred_check_branch
          %240 = sbr.rel (%p238) target = $region32
        $region31: #{tpu_custom_call.1} parent=11 // pred_region
          _
        $region32: #{tpu_custom_call.1} parent=11 // pred_fallthru
          _
        // Predicated region
        $region33: #{tpu_custom_call.1} parent=11 // pred_check
          %p241 = pneg %p183
        $region34: #{tpu_custom_call.1} parent=11 // pred_check_branch
          %243 = sbr.rel (%p241) target = $region36
        $region35: #{tpu_custom_call.1} parent=11 // pred_region
          _
        $region36: #{tpu_custom_call.1} parent=11 // pred_fallthru
          _
      $region12: #{tpu_custom_call.1} parent=5 // pred_fallthru
        _
      %p244 = scmp.lt.s32.totalorder %s19, 4
      // Predicated region
      $region37: #{tpu_custom_call.1} parent=5 // pred_check
        %p245 = pneg %p244
      $region38: #{tpu_custom_call.1} parent=5 // pred_check_branch
        %247 = sbr.rel (%p245) target = $region40
      $region39: #{tpu_custom_call.1} parent=5 // pred_region
        // Predicated region
        $region41: #{tpu_custom_call.1} parent=39 // pred_check
          %p248 = pneg %p51
        $region42: #{tpu_custom_call.1} parent=39 // pred_check_branch
          %250 = sbr.rel (%p248) target = $region44
        $region43: #{tpu_custom_call.1} parent=39 // pred_region
          %s251 = sand.u32 %s41, 1
          %s252 = scalar_lea.sflag [#allocation6], %s251
          %s253 = sand.u32 %s41, 1
          %s254 = smul.addr %s253, 1024
          %s255 = scalar_lea.vmem [#allocation5], %s254
          %257 = vsyncadd %s252, 0
          %s258 = smul.addr %s26, 128
          %s259 = smul.addr %s258, 8
          %s260 = scalar_lea.hbm %s0, %s259
          %s261 = sshll.u32 %s260, 4
          %s262 = int_to_ptr.hbm [resolvable:$true] %s261
          %s263 = sshll.u32 %s255, 4
          %s264 = int_to_ptr.vmem [resolvable:$true] %s263
          %269 = dma.hbm_to_vmem [thread:$0]  %s262, 16384, %s264, %s252, 128, 128, 8
        $region44: #{tpu_custom_call.1} parent=39 // pred_fallthru
          _
      $region40: #{tpu_custom_call.1} parent=5 // pred_fallthru
        _
      %p270 = scmp.le.s32.totalorder 1, %s19
      %p271 = scmp.lt.s32.totalorder %s19, 5
      %p272 = pnand %p270, %p271
      %p273 = pneg %p272
      // Predicated region
      $region45: #{tpu_custom_call.1} parent=5 // pred_check
        _
      $region46: #{tpu_custom_call.1} parent=5 // pred_check_branch
        %275 = sbr.rel (%p272) target = $region48
      $region47: #{tpu_custom_call.1} parent=5 // pred_region
        %s276 = ssub.s32 %s19, 1
        %s277 = sand.u32 %s44, 1
        %s278 = scalar_lea.sflag [#allocation6], %s277
        %s279 = sand.u32 %s44, 1
        %s280 = smul.addr %s279, 1024
        %s281 = scalar_lea.vmem [#allocation5], %s280
        // Predicated region
        $region49: #{tpu_custom_call.1} parent=47 // pred_check
          %p282 = pneg %p57
        $region50: #{tpu_custom_call.1} parent=47 // pred_check_branch
          %284 = sbr.rel (%p282) target = $region52
        $region51: #{tpu_custom_call.1} parent=47 // pred_region
          %286 = dma.done %s278, 16384
        $region52: #{tpu_custom_call.1} parent=47 // pred_fallthru
          _
        %s287 = sand.u32 %s44, 1
        %s288 = scalar_lea.sflag [#allocation6], %s287
        %s289 = sand.u32 %s44, 1
        %s290 = smul.addr %s289, 1024
        %s291 = scalar_lea.vmem [#allocation5], %s290
        %p292 = pneg %p57
        %p293 = pneg %p54
        %p294 = pneg %p78
        %p295 = pneg %p75
        %p296 = pneg %p99
        %p297 = pneg %p96
        %p298 = pneg %p120
        %p299 = pneg %p117
        %p300 = pneg %p141
        %p301 = pneg %p138
        %p302 = pneg %p162
        %p303 = pneg %p159
        %p304 = pneg %p183
        %p305 = pneg %p180
        %p306 = pneg %p211
        %p307 = pneg %p208
        %s308 = sand.u32 %s198, 1
        %s309 = scalar_lea.sflag [#allocation7], %s308
        %s310 = sand.u32 %s198, 1
        %s311 = smul.addr %s310, 512
        %s312 = scalar_lea.vmem [#allocation8], %s311
        %s313 = smul.u32 2, %s29
        %s314 = smul.u32 %s29, 16
        %s315 = scalar_lea.vmem %s281, %s314 [#allocation5]
        %v316 = vld [vmem:[%s315] sm:$0xff]
        %v317 = vld [vmem:[%s315 + $0x8] sm:$0xff]
        %v318 = vld [vmem:[%s315 + $0x20] sm:$0xff]
        %v319 = vld [vmem:[%s315 + $0x28] sm:$0xff]
        %v320 = vld [vmem:[%s315 + $0x40] sm:$0xff]
        %v321 = vld [vmem:[%s315 + $0x48] sm:$0xff]
        %v322 = vld [vmem:[%s315 + $0x60] sm:$0xff]
        %v323 = vld [vmem:[%s315 + $0x68] sm:$0xff]
        %v324 = vld [vmem:[%s315 + $0x80] sm:$0xff]
        %v325 = vld [vmem:[%s315 + $0x88] sm:$0xff]
        %v326 = vld [vmem:[%s315 + $0xa0] sm:$0xff]
        %v327 = vld [vmem:[%s315 + $0xa8] sm:$0xff]
        %v328 = vld [vmem:[%s315 + $0xc0] sm:$0xff]
        %v329 = vld [vmem:[%s315 + $0xc8] sm:$0xff]
        %v330 = vld [vmem:[%s315 + $0xe0] sm:$0xff]
        %v331 = vld [vmem:[%s315 + $0xe8] sm:$0xff]
        %v332 = vld [vmem:[%s315 + $0x100] sm:$0xff]
        %v333 = vld [vmem:[%s315 + $0x108] sm:$0xff]
        %v334 = vld [vmem:[%s315 + $0x120] sm:$0xff]
        %v335 = vld [vmem:[%s315 + $0x128] sm:$0xff]
        %v336 = vld [vmem:[%s315 + $0x140] sm:$0xff]
        %v337 = vld [vmem:[%s315 + $0x148] sm:$0xff]
        %v338 = vld [vmem:[%s315 + $0x160] sm:$0xff]
        %v339 = vld [vmem:[%s315 + $0x168] sm:$0xff]
        %v340 = vld [vmem:[%s315 + $0x180] sm:$0xff]
        %v341 = vld [vmem:[%s315 + $0x188] sm:$0xff]
        %v342 = vld [vmem:[%s315 + $0x1a0] sm:$0xff]
        %v343 = vld [vmem:[%s315 + $0x1a8] sm:$0xff]
        %v344 = vld [vmem:[%s315 + $0x1c0] sm:$0xff]
        %v345 = vld [vmem:[%s315 + $0x1c8] sm:$0xff]
        %v346 = vld [vmem:[%s315 + $0x1e0] sm:$0xff]
        %v347 = vld [vmem:[%s315 + $0x1e8] sm:$0xff]
        %v348 = vld [vmem:[%s315 + $0x200] sm:$0xff]
        %v349 = vld [vmem:[%s315 + $0x208] sm:$0xff]
        %v350 = vld [vmem:[%s315 + $0x220] sm:$0xff]
        %v351 = vld [vmem:[%s315 + $0x228] sm:$0xff]
        %v352 = vld [vmem:[%s315 + $0x240] sm:$0xff]
        %v353 = vld [vmem:[%s315 + $0x248] sm:$0xff]
        %v354 = vld [vmem:[%s315 + $0x260] sm:$0xff]
        %v355 = vld [vmem:[%s315 + $0x268] sm:$0xff]
        %vm356 = vcmask 261120
        %357 = vst.msk [vmem:[%s312] sm:$0xff] %vm356, %v316
        %358 = vst.msk [vmem:[%s312 + $0x8] sm:$0xff] %vm356, %v317
        %359 = vst.msk [vmem:[%s312 + $0x10] sm:$0xff] %vm356, %v318
        %360 = vst.msk [vmem:[%s312 + $0x18] sm:$0xff] %vm356, %v319
        %361 = vst.msk [vmem:[%s312 + $0x20] sm:$0xff] %vm356, %v320
        %362 = vst.msk [vmem:[%s312 + $0x28] sm:$0xff] %vm356, %v321
        %363 = vst.msk [vmem:[%s312 + $0x30] sm:$0xff] %vm356, %v322
        %364 = vst.msk [vmem:[%s312 + $0x38] sm:$0xff] %vm356, %v323
        %365 = vst.msk [vmem:[%s312 + $0x40] sm:$0xff] %vm356, %v324
        %366 = vst.msk [vmem:[%s312 + $0x48] sm:$0xff] %vm356, %v325
        %367 = vst.msk [vmem:[%s312 + $0x50] sm:$0xff] %vm356, %v326
        %368 = vst.msk [vmem:[%s312 + $0x58] sm:$0xff] %vm356, %v327
        %369 = vst.msk [vmem:[%s312 + $0x60] sm:$0xff] %vm356, %v328
        %370 = vst.msk [vmem:[%s312 + $0x68] sm:$0xff] %vm356, %v329
        %371 = vst.msk [vmem:[%s312 + $0x70] sm:$0xff] %vm356, %v330
        %372 = vst.msk [vmem:[%s312 + $0x78] sm:$0xff] %vm356, %v331
        %373 = vst.msk [vmem:[%s312 + $0x80] sm:$0xff] %vm356, %v332
        %374 = vst.msk [vmem:[%s312 + $0x88] sm:$0xff] %vm356, %v333
        %375 = vst.msk [vmem:[%s312 + $0x90] sm:$0xff] %vm356, %v334
        %376 = vst.msk [vmem:[%s312 + $0x98] sm:$0xff] %vm356, %v335
        %377 = vst.msk [vmem:[%s312 + $0xa0] sm:$0xff] %vm356, %v336
        %378 = vst.msk [vmem:[%s312 + $0xa8] sm:$0xff] %vm356, %v337
        %379 = vst.msk [vmem:[%s312 + $0xb0] sm:$0xff] %vm356, %v338
        %380 = vst.msk [vmem:[%s312 + $0xb8] sm:$0xff] %vm356, %v339
        %381 = vst.msk [vmem:[%s312 + $0xc0] sm:$0xff] %vm356, %v340
        %382 = vst.msk [vmem:[%s312 + $0xc8] sm:$0xff] %vm356, %v341
        %383 = vst.msk [vmem:[%s312 + $0xd0] sm:$0xff] %vm356, %v342
        %384 = vst.msk [vmem:[%s312 + $0xd8] sm:$0xff] %vm356, %v343
        %385 = vst.msk [vmem:[%s312 + $0xe0] sm:$0xff] %vm356, %v344
        %386 = vst.msk [vmem:[%s312 + $0xe8] sm:$0xff] %vm356, %v345
        %387 = vst.msk [vmem:[%s312 + $0xf0] sm:$0xff] %vm356, %v346
        %388 = vst.msk [vmem:[%s312 + $0xf8] sm:$0xff] %vm356, %v347
        %389 = vst.msk [vmem:[%s312 + $0x100] sm:$0xff] %vm356, %v348
        %390 = vst.msk [vmem:[%s312 + $0x108] sm:$0xff] %vm356, %v349
        %391 = vst.msk [vmem:[%s312 + $0x110] sm:$0xff] %vm356, %v350
        %392 = vst.msk [vmem:[%s312 + $0x118] sm:$0xff] %vm356, %v351
        %393 = vst.msk [vmem:[%s312 + $0x120] sm:$0xff] %vm356, %v352
        %394 = vst.msk [vmem:[%s312 + $0x128] sm:$0xff] %vm356, %v353
        %395 = vst.msk [vmem:[%s312 + $0x130] sm:$0xff] %vm356, %v354
        %396 = vst.msk [vmem:[%s312 + $0x138] sm:$0xff] %vm356, %v355
        %vm397 = vcmask 277504
        %398 = vst.msk [vmem:[#allocation2] sm:$0xff] %vm397, 0.0
        %399 = vst.msk [vmem:[#allocation2 + $0x8] sm:$0xff] %vm397, 0.0
        %vm400 = vcmask 271360
        %401 = vst.msk [vmem:[#allocation2 + $0x10] sm:$0x3] %vm400, 0.0
        %402 = vst.msk [vmem:[#allocation2 + $0x18] sm:$0xff] %vm397, 0.0
        %403 = vst.msk [vmem:[#allocation2 + $0x20] sm:$0xff] %vm397, 0.0
        %404 = vst.msk [vmem:[#allocation2 + $0x28] sm:$0x3] %vm400, 0.0
        %405 = vst.msk [vmem:[#allocation2 + $0x30] sm:$0xff] %vm397, 0.0
        %406 = vst.msk [vmem:[#allocation2 + $0x38] sm:$0xff] %vm397, 0.0
        %407 = vst.msk [vmem:[#allocation2 + $0x40] sm:$0x3] %vm400, 0.0
        %408 = vst.msk [vmem:[#allocation2 + $0x48] sm:$0xff] %vm397, 0.0
        %409 = vst.msk [vmem:[#allocation2 + $0x50] sm:$0xff] %vm397, 0.0
        %410 = vst.msk [vmem:[#allocation2 + $0x58] sm:$0x3] %vm400, 0.0
        %s411 = sadd.s32 %s314, 640
        %s412 = scalar_lea.vmem %s281, %s411 [#allocation5]
        %v413 = vld [vmem:[%s412] sm:$0xff]
        %v414 = vld [vmem:[%s412 + $0x8] sm:$0xff]
        %v415 = vld [vmem:[%s412 + $0x20] sm:$0xff]
        %v416 = vld [vmem:[%s412 + $0x28] sm:$0xff]
        %v417 = vld [vmem:[%s412 + $0x40] sm:$0xff]
        %v418 = vld [vmem:[%s412 + $0x48] sm:$0xff]
        %v419 = vld [vmem:[%s412 + $0x60] sm:$0xff]
        %v420 = vld [vmem:[%s412 + $0x68] sm:$0xff]
        %429 = vrot.lane.b32.xlu0 %v413, 1
        %v430 = vpop.permute.xlu0 %429
        %431 = vrot.lane.b32.xlu0 %v414, 1
        %v432 = vpop.permute.xlu0 %431
        %433 = vrot.lane.b32.xlu0 %v415, 1
        %v434 = vpop.permute.xlu0 %433
        %435 = vrot.lane.b32.xlu0 %v416, 1
        %v436 = vpop.permute.xlu0 %435
        %437 = vrot.lane.b32.xlu0 %v417, 1
        %v438 = vpop.permute.xlu0 %437
        %439 = vrot.lane.b32.xlu0 %v418, 1
        %v440 = vpop.permute.xlu0 %439
        %441 = vrot.lane.b32.xlu0 %v419, 1
        %v442 = vpop.permute.xlu0 %441
        %443 = vrot.lane.b32.xlu0 %v420, 1
        %v444 = vpop.permute.xlu0 %443
        %vm453 = vcmask 269320
        %454 = vst.msk [vmem:[#allocation2 + $0x1] sm:$0xff] %vm453, %v430
        %455 = vst.msk [vmem:[#allocation2 + $0x9] sm:$0xff] %vm453, %v432
        %456 = vst.msk [vmem:[#allocation2 + $0x19] sm:$0xff] %vm453, %v434
        %457 = vst.msk [vmem:[#allocation2 + $0x21] sm:$0xff] %vm453, %v436
        %458 = vst.msk [vmem:[#allocation2 + $0x31] sm:$0xff] %vm453, %v438
        %459 = vst.msk [vmem:[#allocation2 + $0x39] sm:$0xff] %vm453, %v440
        %460 = vst.msk [vmem:[#allocation2 + $0x49] sm:$0xff] %vm453, %v442
        %461 = vst.msk [vmem:[#allocation2 + $0x51] sm:$0xff] %vm453, %v444
        %p462 = scmp.gt.s32.totalorder %s29, 0
        // Predicated region
        $region53: #{tpu_custom_call.1} parent=47 // pred_check
          %p463 = pneg %p462
        $region54: #{tpu_custom_call.1} parent=47 // pred_check_branch
          %465 = sbr.rel (%p463) target = $region56
        $region55: #{tpu_custom_call.1} parent=47 // pred_region
          %s466 = ssub.s32 %s314, 1
          %s467 = sadd.s32 %s466, 640
          %s468 = scalar_lea.vmem %s281, %s467 [#allocation5]
          %v469 = vld [vmem:[%s468] sm:$0x1]
          %v470 = vld [vmem:[%s468 + $0x20] sm:$0x1]
          %v471 = vld [vmem:[%s468 + $0x40] sm:$0x1]
          %v472 = vld [vmem:[%s468 + $0x60] sm:$0x1]
          %477 = vrot.lane.b32.xlu0 %v469, 1
          %v478 = vpop.permute.xlu0 %477
          %479 = vrot.lane.b32.xlu0 %v470, 1
          %v480 = vpop.permute.xlu0 %479
          %481 = vrot.lane.b32.xlu0 %v471, 1
          %v482 = vpop.permute.xlu0 %481
          %483 = vrot.lane.b32.xlu0 %v472, 1
          %v484 = vpop.permute.xlu0 %483
          %vm489 = vcmask 262152
          %490 = vst.msk [vmem:[#allocation2] sm:$0x1] %vm489, %v478
          %491 = vst.msk [vmem:[#allocation2 + $0x18] sm:$0x1] %vm489, %v480
          %492 = vst.msk [vmem:[#allocation2 + $0x30] sm:$0x1] %vm489, %v482
          %493 = vst.msk [vmem:[#allocation2 + $0x48] sm:$0x1] %vm489, %v484
        $region56: #{tpu_custom_call.1} parent=47 // pred_fallthru
          _
        %p494 = scmp.lt.s32.totalorder %s29, 1
        // Predicated region
        $region57: #{tpu_custom_call.1} parent=47 // pred_check
          %p495 = pneg %p494
        $region58: #{tpu_custom_call.1} parent=47 // pred_check_branch
          %497 = sbr.rel (%p495) target = $region60
        $region59: #{tpu_custom_call.1} parent=47 // pred_region
          %s498 = sadd.s32 %s314, 16
          %s499 = sadd.s32 %s498, 640
          %s500 = scalar_lea.vmem %s281, %s499 [#allocation5]
          %v501 = vld [vmem:[%s500] sm:$0x1]
          %v502 = vld [vmem:[%s500 + $0x20] sm:$0x1]
          %v503 = vld [vmem:[%s500 + $0x40] sm:$0x1]
          %v504 = vld [vmem:[%s500 + $0x60] sm:$0x1]
          %509 = vrot.lane.b32.xlu0 %v501, 1
          %v510 = vpop.permute.xlu0 %509
          %511 = vrot.lane.b32.xlu0 %v502, 1
          %v512 = vpop.permute.xlu0 %511
          %513 = vrot.lane.b32.xlu0 %v503, 1
          %v514 = vpop.permute.xlu0 %513
          %515 = vrot.lane.b32.xlu0 %v504, 1
          %v516 = vpop.permute.xlu0 %515
          %vm521 = vcmask 262152
          %522 = vst.msk [vmem:[#allocation2 + $0x11] sm:$0x1] %vm521, %v510
          %523 = vst.msk [vmem:[#allocation2 + $0x29] sm:$0x1] %vm521, %v512
          %524 = vst.msk [vmem:[#allocation2 + $0x41] sm:$0x1] %vm521, %v514
          %525 = vst.msk [vmem:[#allocation2 + $0x59] sm:$0x1] %vm521, %v516
        $region60: #{tpu_custom_call.1} parent=47 // pred_fallthru
          _
        %v526 = vld [vmem:[%s1] sm:$0x7]
        %v527 = vld [vmem:[%s1 + $0x4] sm:$0x7]
        %v528 = vld [vmem:[%s1 + $0x8] sm:$0x7]
        %v529 = vld [vmem:[%s1 + $0xc] sm:$0x7]
        %v530 = vld [vmem:[#allocation2 + $0x1] sm:$0xff]
        %v531 = vld [vmem:[#allocation2 + $0x9] sm:$0xff]
        %v532 = vld [vmem:[#allocation2 + $0x19] sm:$0xff]
        %v533 = vld [vmem:[#allocation2 + $0x21] sm:$0xff]
        %v534 = vld [vmem:[#allocation2 + $0x31] sm:$0xff]
        %v535 = vld [vmem:[#allocation2 + $0x39] sm:$0xff]
        %v536 = vld [vmem:[#allocation2 + $0x49] sm:$0xff]
        %v537 = vld [vmem:[#allocation2 + $0x51] sm:$0xff]
        %v542 = vrot.slane %v526, 1
        %v543 = vrot.slane %v527, 1
        %v544 = vrot.slane %v528, 1
        %v545 = vrot.slane %v529, 1
        %546 = vrot.lane.b32.xlu0 %v542, 127
        %v547 = vpop.permute.xlu0 %546
        %548 = vrot.lane.b32.xlu0 %v543, 127
        %v549 = vpop.permute.xlu0 %548
        %550 = vrot.lane.b32.xlu0 %v544, 127
        %v551 = vpop.permute.xlu0 %550
        %552 = vrot.lane.b32.xlu0 %v545, 127
        %v553 = vpop.permute.xlu0 %552
        %s554 = vtos %v547
        %v555 = vstv %s554
        %s557 = vtos %v549
        %v558 = vstv %s557
        %s560 = vtos %v551
        %v561 = vstv %s560
        %s563 = vtos %v553
        %v564 = vstv %s563
        %v566 = vmul.f32 %v530, %v555
        %v567 = vmul.f32 %v531, %v555
        %v568 = vmul.f32 %v532, %v558
        %v569 = vmul.f32 %v533, %v558
        %v570 = vmul.f32 %v534, %v561
        %v571 = vmul.f32 %v535, %v561
        %v572 = vmul.f32 %v536, %v564
        %v573 = vmul.f32 %v537, %v564
        %v574 = vld [vmem:[#allocation2] sm:$0xff]
        %v575 = vld [vmem:[#allocation2 + $0x8] sm:$0xff]
        %v576 = vld [vmem:[#allocation2 + $0x18] sm:$0xff]
        %v577 = vld [vmem:[#allocation2 + $0x20] sm:$0xff]
        %v578 = vld [vmem:[#allocation2 + $0x30] sm:$0xff]
        %v579 = vld [vmem:[#allocation2 + $0x38] sm:$0xff]
        %v580 = vld [vmem:[#allocation2 + $0x48] sm:$0xff]
        %v581 = vld [vmem:[#allocation2 + $0x50] sm:$0xff]
        %s582 = vtos %v526
        %v583 = vstv %s582
        %s585 = vtos %v527
        %v586 = vstv %s585
        %s588 = vtos %v528
        %v589 = vstv %s588
        %s591 = vtos %v529
        %v592 = vstv %s591
        %v594 = vmul.f32 %v574, %v583
        %v595 = vmul.f32 %v575, %v583
        %v596 = vmul.f32 %v576, %v586
        %v597 = vmul.f32 %v577, %v586
        %v598 = vmul.f32 %v578, %v589
        %v599 = vmul.f32 %v579, %v589
        %v600 = vmul.f32 %v580, %v592
        %v601 = vmul.f32 %v581, %v592
        %610 = vrot.lane.b32.xlu0 %v594, 1
        %v611 = vpop.permute.xlu0 %610
        %612 = vrot.lane.b32.xlu0 %v595, 1
        %v613 = vpop.permute.xlu0 %612
        %614 = vrot.lane.b32.xlu0 %v596, 1
        %v615 = vpop.permute.xlu0 %614
        %616 = vrot.lane.b32.xlu0 %v597, 1
        %v617 = vpop.permute.xlu0 %616
        %618 = vrot.lane.b32.xlu0 %v598, 1
        %v619 = vpop.permute.xlu0 %618
        %620 = vrot.lane.b32.xlu0 %v599, 1
        %v621 = vpop.permute.xlu0 %620
        %622 = vrot.lane.b32.xlu0 %v600, 1
        %v623 = vpop.permute.xlu0 %622
        %624 = vrot.lane.b32.xlu0 %v601, 1
        %v625 = vpop.permute.xlu0 %624
        %v634 = vadd.f32 %v566, %v611
        %v635 = vadd.f32 %v567, %v613
        %v636 = vadd.f32 %v568, %v615
        %v637 = vadd.f32 %v569, %v617
        %v638 = vadd.f32 %v570, %v619
        %v639 = vadd.f32 %v571, %v621
        %v640 = vadd.f32 %v572, %v623
        %v641 = vadd.f32 %v573, %v625
        %642 = vrot.lane.b32.xlu0 %v526, 127
        %v643 = vpop.permute.xlu0 %642
        %644 = vrot.lane.b32.xlu0 %v527, 127
        %v645 = vpop.permute.xlu0 %644
        %646 = vrot.lane.b32.xlu0 %v528, 127
        %v647 = vpop.permute.xlu0 %646
        %648 = vrot.lane.b32.xlu0 %v529, 127
        %v649 = vpop.permute.xlu0 %648
        %s650 = vtos %v643
        %v651 = vstv %s650
        %s653 = vtos %v645
        %v654 = vstv %s653
        %s656 = vtos %v647
        %v657 = vstv %s656
        %s659 = vtos %v649
        %v660 = vstv %s659
        %v662 = vmul.f32 %v574, %v651
        %v663 = vmul.f32 %v575, %v651
        %v664 = vmul.f32 %v576, %v654
        %v665 = vmul.f32 %v577, %v654
        %v666 = vmul.f32 %v578, %v657
        %v667 = vmul.f32 %v579, %v657
        %v668 = vmul.f32 %v580, %v660
        %v669 = vmul.f32 %v581, %v660
        %v670 = vadd.f32 %v634, %v662
        %v671 = vadd.f32 %v635, %v663
        %v672 = vadd.f32 %v636, %v664
        %v673 = vadd.f32 %v637, %v665
        %v674 = vadd.f32 %v638, %v666
        %v675 = vadd.f32 %v639, %v667
        %v676 = vadd.f32 %v640, %v668
        %v677 = vadd.f32 %v641, %v669
        %678 = vrot.lane.b32.xlu0 %v526, 126
        %v679 = vpop.permute.xlu0 %678
        %680 = vrot.lane.b32.xlu0 %v527, 126
        %v681 = vpop.permute.xlu0 %680
        %682 = vrot.lane.b32.xlu0 %v528, 126
        %v683 = vpop.permute.xlu0 %682
        %684 = vrot.lane.b32.xlu0 %v529, 126
        %v685 = vpop.permute.xlu0 %684
        %s686 = vtos %v679
        %v687 = vstv %s686
        %s689 = vtos %v681
        %v690 = vstv %s689
        %s692 = vtos %v683
        %v693 = vstv %s692
        %s695 = vtos %v685
        %v696 = vstv %s695
        %v698 = vmul.f32 %v574, %v687
        %v699 = vmul.f32 %v575, %v687
        %v700 = vmul.f32 %v576, %v690
        %v701 = vmul.f32 %v577, %v690
        %v702 = vmul.f32 %v578, %v693
        %v703 = vmul.f32 %v579, %v693
        %v704 = vmul.f32 %v580, %v696
        %v705 = vmul.f32 %v581, %v696
        %714 = vrot.lane.b32.xlu0 %v698, 127
        %v715 = vpop.permute.xlu0 %714
        %716 = vrot.lane.b32.xlu0 %v699, 127
        %v717 = vpop.permute.xlu0 %716
        %718 = vrot.lane.b32.xlu0 %v700, 127
        %v719 = vpop.permute.xlu0 %718
        %720 = vrot.lane.b32.xlu0 %v701, 127
        %v721 = vpop.permute.xlu0 %720
        %722 = vrot.lane.b32.xlu0 %v702, 127
        %v723 = vpop.permute.xlu0 %722
        %724 = vrot.lane.b32.xlu0 %v703, 127
        %v725 = vpop.permute.xlu0 %724
        %726 = vrot.lane.b32.xlu0 %v704, 127
        %v727 = vpop.permute.xlu0 %726
        %728 = vrot.lane.b32.xlu0 %v705, 127
        %v729 = vpop.permute.xlu0 %728
        %v738 = vadd.f32 %v670, %v715
        %v739 = vadd.f32 %v671, %v717
        %v740 = vadd.f32 %v672, %v719
        %v741 = vadd.f32 %v673, %v721
        %v742 = vadd.f32 %v674, %v723
        %v743 = vadd.f32 %v675, %v725
        %v744 = vadd.f32 %v676, %v727
        %v745 = vadd.f32 %v677, %v729
        %s746 = vtos %v542
        %v747 = vstv %s746
        %s749 = vtos %v543
        %v750 = vstv %s749
        %s752 = vtos %v544
        %v753 = vstv %s752
        %s755 = vtos %v545
        %v756 = vstv %s755
        %v758 = vmul.f32 %v530, %v747
        %v759 = vmul.f32 %v531, %v747
        %v760 = vmul.f32 %v532, %v750
        %v761 = vmul.f32 %v533, %v750
        %v762 = vmul.f32 %v534, %v753
        %v763 = vmul.f32 %v535, %v753
        %v764 = vmul.f32 %v536, %v756
        %v765 = vmul.f32 %v537, %v756
        %774 = vrot.lane.b32.xlu0 %v758, 1
        %v775 = vpop.permute.xlu0 %774
        %776 = vrot.lane.b32.xlu0 %v759, 1
        %v777 = vpop.permute.xlu0 %776
        %778 = vrot.lane.b32.xlu0 %v760, 1
        %v779 = vpop.permute.xlu0 %778
        %780 = vrot.lane.b32.xlu0 %v761, 1
        %v781 = vpop.permute.xlu0 %780
        %782 = vrot.lane.b32.xlu0 %v762, 1
        %v783 = vpop.permute.xlu0 %782
        %784 = vrot.lane.b32.xlu0 %v763, 1
        %v785 = vpop.permute.xlu0 %784
        %786 = vrot.lane.b32.xlu0 %v764, 1
        %v787 = vpop.permute.xlu0 %786
        %788 = vrot.lane.b32.xlu0 %v765, 1
        %v789 = vpop.permute.xlu0 %788
        %v798 = vadd.f32 %v738, %v775
        %v799 = vadd.f32 %v739, %v777
        %v800 = vadd.f32 %v740, %v779
        %v801 = vadd.f32 %v741, %v781
        %v802 = vadd.f32 %v742, %v783
        %v803 = vadd.f32 %v743, %v785
        %v804 = vadd.f32 %v744, %v787
        %v805 = vadd.f32 %v745, %v789
        %806 = vrot.lane.b32.xlu0 %v542, 126
        %v807 = vpop.permute.xlu0 %806
        %808 = vrot.lane.b32.xlu0 %v543, 126
        %v809 = vpop.permute.xlu0 %808
        %810 = vrot.lane.b32.xlu0 %v544, 126
        %v811 = vpop.permute.xlu0 %810
        %812 = vrot.lane.b32.xlu0 %v545, 126
        %v813 = vpop.permute.xlu0 %812
        %s814 = vtos %v807
        %v815 = vstv %s814
        %s817 = vtos %v809
        %v818 = vstv %s817
        %s820 = vtos %v811
        %v821 = vstv %s820
        %s823 = vtos %v813
        %v824 = vstv %s823
        %v826 = vmul.f32 %v530, %v815
        %v827 = vmul.f32 %v531, %v815
        %v828 = vmul.f32 %v532, %v818
        %v829 = vmul.f32 %v533, %v818
        %v830 = vmul.f32 %v534, %v821
        %v831 = vmul.f32 %v535, %v821
        %v832 = vmul.f32 %v536, %v824
        %v833 = vmul.f32 %v537, %v824
        %842 = vrot.lane.b32.xlu0 %v826, 127
        %v843 = vpop.permute.xlu0 %842
        %844 = vrot.lane.b32.xlu0 %v827, 127
        %v845 = vpop.permute.xlu0 %844
        %846 = vrot.lane.b32.xlu0 %v828, 127
        %v847 = vpop.permute.xlu0 %846
        %848 = vrot.lane.b32.xlu0 %v829, 127
        %v849 = vpop.permute.xlu0 %848
        %850 = vrot.lane.b32.xlu0 %v830, 127
        %v851 = vpop.permute.xlu0 %850
        %852 = vrot.lane.b32.xlu0 %v831, 127
        %v853 = vpop.permute.xlu0 %852
        %854 = vrot.lane.b32.xlu0 %v832, 127
        %v855 = vpop.permute.xlu0 %854
        %856 = vrot.lane.b32.xlu0 %v833, 127
        %v857 = vpop.permute.xlu0 %856
        %v866 = vadd.f32 %v798, %v843
        %v867 = vadd.f32 %v799, %v845
        %v868 = vadd.f32 %v800, %v847
        %v869 = vadd.f32 %v801, %v849
        %v870 = vadd.f32 %v802, %v851
        %v871 = vadd.f32 %v803, %v853
        %v872 = vadd.f32 %v804, %v855
        %v873 = vadd.f32 %v805, %v857
        %v874 = vld [vmem:[#allocation2 + $0x2] sm:$0xff]
        %v875 = vld [vmem:[#allocation2 + $0xa] sm:$0xff]
        %v876 = vld [vmem:[#allocation2 + $0x1a] sm:$0xff]
        %v877 = vld [vmem:[#allocation2 + $0x22] sm:$0xff]
        %v878 = vld [vmem:[#allocation2 + $0x32] sm:$0xff]
        %v879 = vld [vmem:[#allocation2 + $0x3a] sm:$0xff]
        %v880 = vld [vmem:[#allocation2 + $0x4a] sm:$0xff]
        %v881 = vld [vmem:[#allocation2 + $0x52] sm:$0xff]
        %v882 = vrot.slane %v526, 2
        %v883 = vrot.slane %v527, 2
        %v884 = vrot.slane %v528, 2
        %v885 = vrot.slane %v529, 2
        %s886 = vtos %v882
        %v887 = vstv %s886
        %s889 = vtos %v883
        %v890 = vstv %s889
        %s892 = vtos %v884
        %v893 = vstv %s892
        %s895 = vtos %v885
        %v896 = vstv %s895
        %v898 = vmul.f32 %v874, %v887
        %v899 = vmul.f32 %v875, %v887
        %v900 = vmul.f32 %v876, %v890
        %v901 = vmul.f32 %v877, %v890
        %v902 = vmul.f32 %v878, %v893
        %v903 = vmul.f32 %v879, %v893
        %v904 = vmul.f32 %v880, %v896
        %v905 = vmul.f32 %v881, %v896
        %914 = vrot.lane.b32.xlu0 %v898, 1
        %v915 = vpop.permute.xlu0 %914
        %916 = vrot.lane.b32.xlu0 %v899, 1
        %v917 = vpop.permute.xlu0 %916
        %918 = vrot.lane.b32.xlu0 %v900, 1
        %v919 = vpop.permute.xlu0 %918
        %920 = vrot.lane.b32.xlu0 %v901, 1
        %v921 = vpop.permute.xlu0 %920
        %922 = vrot.lane.b32.xlu0 %v902, 1
        %v923 = vpop.permute.xlu0 %922
        %924 = vrot.lane.b32.xlu0 %v903, 1
        %v925 = vpop.permute.xlu0 %924
        %926 = vrot.lane.b32.xlu0 %v904, 1
        %v927 = vpop.permute.xlu0 %926
        %928 = vrot.lane.b32.xlu0 %v905, 1
        %v929 = vpop.permute.xlu0 %928
        %v938 = vadd.f32 %v866, %v915
        %v939 = vadd.f32 %v867, %v917
        %v940 = vadd.f32 %v868, %v919
        %v941 = vadd.f32 %v869, %v921
        %v942 = vadd.f32 %v870, %v923
        %v943 = vadd.f32 %v871, %v925
        %v944 = vadd.f32 %v872, %v927
        %v945 = vadd.f32 %v873, %v929
        %946 = vrot.lane.b32.xlu0 %v882, 127
        %v947 = vpop.permute.xlu0 %946
        %948 = vrot.lane.b32.xlu0 %v883, 127
        %v949 = vpop.permute.xlu0 %948
        %950 = vrot.lane.b32.xlu0 %v884, 127
        %v951 = vpop.permute.xlu0 %950
        %952 = vrot.lane.b32.xlu0 %v885, 127
        %v953 = vpop.permute.xlu0 %952
        %s954 = vtos %v947
        %v955 = vstv %s954
        %s957 = vtos %v949
        %v958 = vstv %s957
        %s960 = vtos %v951
        %v961 = vstv %s960
        %s963 = vtos %v953
        %v964 = vstv %s963
        %v966 = vmul.f32 %v874, %v955
        %v967 = vmul.f32 %v875, %v955
        %v968 = vmul.f32 %v876, %v958
        %v969 = vmul.f32 %v877, %v958
        %v970 = vmul.f32 %v878, %v961
        %v971 = vmul.f32 %v879, %v961
        %v972 = vmul.f32 %v880, %v964
        %v973 = vmul.f32 %v881, %v964
        %v974 = vadd.f32 %v938, %v966
        %v975 = vadd.f32 %v939, %v967
        %v976 = vadd.f32 %v940, %v968
        %v977 = vadd.f32 %v941, %v969
        %v978 = vadd.f32 %v942, %v970
        %v979 = vadd.f32 %v943, %v971
        %v980 = vadd.f32 %v944, %v972
        %v981 = vadd.f32 %v945, %v973
        %982 = vrot.lane.b32.xlu0 %v882, 126
        %v983 = vpop.permute.xlu0 %982
        %984 = vrot.lane.b32.xlu0 %v883, 126
        %v985 = vpop.permute.xlu0 %984
        %986 = vrot.lane.b32.xlu0 %v884, 126
        %v987 = vpop.permute.xlu0 %986
        %988 = vrot.lane.b32.xlu0 %v885, 126
        %v989 = vpop.permute.xlu0 %988
        %s990 = vtos %v983
        %v991 = vstv %s990
        %s993 = vtos %v985
        %v994 = vstv %s993
        %s996 = vtos %v987
        %v997 = vstv %s996
        %s999 = vtos %v989
        %v1000 = vstv %s999
        %v1002 = vmul.f32 %v874, %v991
        %v1003 = vmul.f32 %v875, %v991
        %v1004 = vmul.f32 %v876, %v994
        %v1005 = vmul.f32 %v877, %v994
        %v1006 = vmul.f32 %v878, %v997
        %v1007 = vmul.f32 %v879, %v997
        %v1008 = vmul.f32 %v880, %v1000
        %v1009 = vmul.f32 %v881, %v1000
        %1018 = vrot.lane.b32.xlu0 %v1002, 127
        %v1019 = vpop.permute.xlu0 %1018
        %1020 = vrot.lane.b32.xlu0 %v1003, 127
        %v1021 = vpop.permute.xlu0 %1020
        %1022 = vrot.lane.b32.xlu0 %v1004, 127
        %v1023 = vpop.permute.xlu0 %1022
        %1024 = vrot.lane.b32.xlu0 %v1005, 127
        %v1025 = vpop.permute.xlu0 %1024
        %1026 = vrot.lane.b32.xlu0 %v1006, 127
        %v1027 = vpop.permute.xlu0 %1026
        %1028 = vrot.lane.b32.xlu0 %v1007, 127
        %v1029 = vpop.permute.xlu0 %1028
        %1030 = vrot.lane.b32.xlu0 %v1008, 127
        %v1031 = vpop.permute.xlu0 %1030
        %1032 = vrot.lane.b32.xlu0 %v1009, 127
        %v1033 = vpop.permute.xlu0 %1032
        %v1042 = vadd.f32 %v974, %v1019
        %v1043 = vadd.f32 %v975, %v1021
        %v1044 = vadd.f32 %v976, %v1023
        %v1045 = vadd.f32 %v977, %v1025
        %v1046 = vadd.f32 %v978, %v1027
        %v1047 = vadd.f32 %v979, %v1029
        %v1048 = vadd.f32 %v980, %v1031
        %v1049 = vadd.f32 %v981, %v1033
        %v1050 = vld [vmem:[%s2] sm:$0x1]
        %v1051 = vld [vmem:[%s2 + $0x1] sm:$0x1]
        %v1052 = vld [vmem:[%s2 + $0x2] sm:$0x1]
        %v1053 = vld [vmem:[%s2 + $0x3] sm:$0x1]
        %v1058 = vperm.slane %v1050, 0
        %v1059 = vperm.slane %v1051, 0
        %v1060 = vperm.slane %v1052, 0
        %v1061 = vperm.slane %v1053, 0
        %1062 = vset.pattern.permute.xlu0 0
        %1063 = vperm.xlu0 %1062, %v1058
        %v1064 = vpop.permute.xlu0 %1063
        %1066 = vset.pattern.permute.xlu0 0
        %1067 = vperm.xlu0 %1066, %v1059
        %v1068 = vpop.permute.xlu0 %1067
        %1070 = vset.pattern.permute.xlu0 0
        %1071 = vperm.xlu0 %1070, %v1060
        %v1072 = vpop.permute.xlu0 %1071
        %1074 = vset.pattern.permute.xlu0 0
        %1075 = vperm.xlu0 %1074, %v1061
        %v1076 = vpop.permute.xlu0 %1075
        %v1078 = vadd.f32 %v1042, %v1064
        %v1079 = vadd.f32 %v1043, %v1064
        %v1080 = vadd.f32 %v1044, %v1068
        %v1081 = vadd.f32 %v1045, %v1068
        %v1082 = vadd.f32 %v1046, %v1072
        %v1083 = vadd.f32 %v1047, %v1072
        %v1084 = vadd.f32 %v1048, %v1076
        %v1085 = vadd.f32 %v1049, %v1076
        %1094 = vrot.lane.b32.xlu0 %v1078, 127
        %v1095 = vpop.permute.xlu0 %1094
        %1096 = vrot.lane.b32.xlu0 %v1079, 127
        %v1097 = vpop.permute.xlu0 %1096
        %1098 = vrot.lane.b32.xlu0 %v1080, 127
        %v1099 = vpop.permute.xlu0 %1098
        %1100 = vrot.lane.b32.xlu0 %v1081, 127
        %v1101 = vpop.permute.xlu0 %1100
        %1102 = vrot.lane.b32.xlu0 %v1082, 127
        %v1103 = vpop.permute.xlu0 %1102
        %1104 = vrot.lane.b32.xlu0 %v1083, 127
        %v1105 = vpop.permute.xlu0 %1104
        %1106 = vrot.lane.b32.xlu0 %v1084, 127
        %v1107 = vpop.permute.xlu0 %1106
        %1108 = vrot.lane.b32.xlu0 %v1085, 127
        %v1109 = vpop.permute.xlu0 %1108
        %s1118 = scalar_lea.vmem %s312, 320 [#allocation8]
        %1119 = vst.msk [vmem:[%s1118] sm:$0xff] %vm356, %v1095
        %1120 = vst.msk [vmem:[%s1118 + $0x8] sm:$0xff] %vm356, %v1097
        %1121 = vst.msk [vmem:[%s1118 + $0x10] sm:$0xff] %vm356, %v1099
        %1122 = vst.msk [vmem:[%s1118 + $0x18] sm:$0xff] %vm356, %v1101
        %1123 = vst.msk [vmem:[%s1118 + $0x20] sm:$0xff] %vm356, %v1103
        %1124 = vst.msk [vmem:[%s1118 + $0x28] sm:$0xff] %vm356, %v1105
        %1125 = vst.msk [vmem:[%s1118 + $0x30] sm:$0xff] %vm356, %v1107
        %1126 = vst.msk [vmem:[%s1118 + $0x38] sm:$0xff] %vm356, %v1109
        %vm1127 = vcmask 343040
        %1128 = vst.msk [vmem:[#allocation3] sm:$0xff] %vm1127, 0.0
        %1129 = vst.msk [vmem:[#allocation3 + $0x8] sm:$0xff] %vm1127, 0.0
        %1130 = vst.msk [vmem:[#allocation3 + $0x10] sm:$0xff] %vm1127, 0.0
        %1131 = vst.msk [vmem:[#allocation3 + $0x18] sm:$0xff] %vm1127, 0.0
        %1132 = vst.msk [vmem:[#allocation3 + $0x20] sm:$0xff] %vm1127, 0.0
        %1133 = vst.msk [vmem:[#allocation3 + $0x28] sm:$0xff] %vm1127, 0.0
        %1134 = vst.msk [vmem:[#allocation3 + $0x30] sm:$0xff] %vm1127, 0.0
        %1135 = vst.msk [vmem:[#allocation3 + $0x38] sm:$0xff] %vm1127, 0.0
        %s1136 = sadd.s32 %s314, 768
        %s1137 = scalar_lea.vmem %s281, %s1136 [#allocation5]
        %v1138 = vld [vmem:[%s1137] sm:$0xff]
        %v1139 = vld [vmem:[%s1137 + $0x8] sm:$0xff]
        %v1140 = vld [vmem:[%s1137 + $0x20] sm:$0xff]
        %v1141 = vld [vmem:[%s1137 + $0x28] sm:$0xff]
        %v1142 = vld [vmem:[%s1137 + $0x40] sm:$0xff]
        %v1143 = vld [vmem:[%s1137 + $0x48] sm:$0xff]
        %v1144 = vld [vmem:[%s1137 + $0x60] sm:$0xff]
        %v1145 = vld [vmem:[%s1137 + $0x68] sm:$0xff]
        %1154 = vrot.lane.b32.xlu0 %v1138, 5
        %v1155 = vpop.permute.xlu0 %1154
        %1156 = vrot.lane.b32.xlu0 %v1139, 5
        %v1157 = vpop.permute.xlu0 %1156
        %1158 = vrot.lane.b32.xlu0 %v1140, 5
        %v1159 = vpop.permute.xlu0 %1158
        %1160 = vrot.lane.b32.xlu0 %v1141, 5
        %v1161 = vpop.permute.xlu0 %1160
        %1162 = vrot.lane.b32.xlu0 %v1142, 5
        %v1163 = vpop.permute.xlu0 %1162
        %1164 = vrot.lane.b32.xlu0 %v1143, 5
        %v1165 = vpop.permute.xlu0 %1164
        %1166 = vrot.lane.b32.xlu0 %v1144, 5
        %v1167 = vpop.permute.xlu0 %1166
        %1168 = vrot.lane.b32.xlu0 %v1145, 5
        %v1169 = vpop.permute.xlu0 %1168
        %vm1178 = vcmask 302120
        %1179 = vst.msk [vmem:[#allocation3] sm:$0xff] %vm1178, %v1155
        %1180 = vst.msk [vmem:[#allocation3 + $0x8] sm:$0xff] %vm1178, %v1157
        %1181 = vst.msk [vmem:[#allocation3 + $0x10] sm:$0xff] %vm1178, %v1159
        %1182 = vst.msk [vmem:[#allocation3 + $0x18] sm:$0xff] %vm1178, %v1161
        %1183 = vst.msk [vmem:[#allocation3 + $0x20] sm:$0xff] %vm1178, %v1163
        %1184 = vst.msk [vmem:[#allocation3 + $0x28] sm:$0xff] %vm1178, %v1165
        %1185 = vst.msk [vmem:[#allocation3 + $0x30] sm:$0xff] %vm1178, %v1167
        %1186 = vst.msk [vmem:[#allocation3 + $0x38] sm:$0xff] %vm1178, %v1169
        %v1187 = vld [vmem:[%s3] sm:$0x1]
        %v1188 = vld [vmem:[%s3 + $0x1] sm:$0x1]
        %v1189 = vld [vmem:[%s3 + $0x2] sm:$0x1]
        %v1190 = vld [vmem:[%s3 + $0x3] sm:$0x1]
        %v1191 = vld [vmem:[#allocation3] sm:$0xff]
        %v1192 = vld [vmem:[#allocation3 + $0x8] sm:$0xff]
        %v1193 = vld [vmem:[#allocation3 + $0x10] sm:$0xff]
        %v1194 = vld [vmem:[#allocation3 + $0x18] sm:$0xff]
        %v1195 = vld [vmem:[#allocation3 + $0x20] sm:$0xff]
        %v1196 = vld [vmem:[#allocation3 + $0x28] sm:$0xff]
        %v1197 = vld [vmem:[#allocation3 + $0x30] sm:$0xff]
        %v1198 = vld [vmem:[#allocation3 + $0x38] sm:$0xff]
        %v1203 = vperm.slane %v1187, 0
        %v1204 = vperm.slane %v1188, 0
        %v1205 = vperm.slane %v1189, 0
        %v1206 = vperm.slane %v1190, 0
        %1207 = vset.pattern.permute.xlu0 5
        %1208 = vperm.xlu0 %1207, %v1203
        %v1209 = vpop.permute.xlu0 %1208
        %1211 = vset.pattern.permute.xlu0 5
        %1212 = vperm.xlu0 %1211, %v1204
        %v1213 = vpop.permute.xlu0 %1212
        %1215 = vset.pattern.permute.xlu0 5
        %1216 = vperm.xlu0 %1215, %v1205
        %v1217 = vpop.permute.xlu0 %1216
        %1219 = vset.pattern.permute.xlu0 5
        %1220 = vperm.xlu0 %1219, %v1206
        %v1221 = vpop.permute.xlu0 %1220
        %v1223 = vmul.f32 %v1191, %v1209
        %v1224 = vmul.f32 %v1192, %v1209
        %v1225 = vmul.f32 %v1193, %v1213
        %v1226 = vmul.f32 %v1194, %v1213
        %v1227 = vmul.f32 %v1195, %v1217
        %v1228 = vmul.f32 %v1196, %v1217
        %v1229 = vmul.f32 %v1197, %v1221
        %v1230 = vmul.f32 %v1198, %v1221
        %1231 = vset.pattern.permute.xlu0 0
        %1232 = vperm.xlu0 %1231, %v1203
        %v1233 = vpop.permute.xlu0 %1232
        %1235 = vset.pattern.permute.xlu0 0
        %1236 = vperm.xlu0 %1235, %v1204
        %v1237 = vpop.permute.xlu0 %1236
        %1239 = vset.pattern.permute.xlu0 0
        %1240 = vperm.xlu0 %1239, %v1205
        %v1241 = vpop.permute.xlu0 %1240
        %1243 = vset.pattern.permute.xlu0 0
        %1244 = vperm.xlu0 %1243, %v1206
        %v1245 = vpop.permute.xlu0 %1244
        %v1247 = vmul.f32 %v1191, %v1233
        %v1248 = vmul.f32 %v1192, %v1233
        %v1249 = vmul.f32 %v1193, %v1237
        %v1250 = vmul.f32 %v1194, %v1237
        %v1251 = vmul.f32 %v1195, %v1241
        %v1252 = vmul.f32 %v1196, %v1241
        %v1253 = vmul.f32 %v1197, %v1245
        %v1254 = vmul.f32 %v1198, %v1245
        %1263 = vrot.lane.b32.xlu0 %v1247, 5
        %v1264 = vpop.permute.xlu0 %1263
        %1265 = vrot.lane.b32.xlu0 %v1248, 5
        %v1266 = vpop.permute.xlu0 %1265
        %1267 = vrot.lane.b32.xlu0 %v1249, 5
        %v1268 = vpop.permute.xlu0 %1267
        %1269 = vrot.lane.b32.xlu0 %v1250, 5
        %v1270 = vpop.permute.xlu0 %1269
        %1271 = vrot.lane.b32.xlu0 %v1251, 5
        %v1272 = vpop.permute.xlu0 %1271
        %1273 = vrot.lane.b32.xlu0 %v1252, 5
        %v1274 = vpop.permute.xlu0 %1273
        %1275 = vrot.lane.b32.xlu0 %v1253, 5
        %v1276 = vpop.permute.xlu0 %1275
        %1277 = vrot.lane.b32.xlu0 %v1254, 5
        %v1278 = vpop.permute.xlu0 %1277
        %v1287 = vadd.f32 %v1223, %v1264
        %v1288 = vadd.f32 %v1224, %v1266
        %v1289 = vadd.f32 %v1225, %v1268
        %v1290 = vadd.f32 %v1226, %v1270
        %v1291 = vadd.f32 %v1227, %v1272
        %v1292 = vadd.f32 %v1228, %v1274
        %v1293 = vadd.f32 %v1229, %v1276
        %v1294 = vadd.f32 %v1230, %v1278
        %1295 = vset.pattern.permute.xlu0 1
        %1296 = vperm.xlu0 %1295, %v1203
        %v1297 = vpop.permute.xlu0 %1296
        %1299 = vset.pattern.permute.xlu0 1
        %1300 = vperm.xlu0 %1299, %v1204
        %v1301 = vpop.permute.xlu0 %1300
        %1303 = vset.pattern.permute.xlu0 1
        %1304 = vperm.xlu0 %1303, %v1205
        %v1305 = vpop.permute.xlu0 %1304
        %1307 = vset.pattern.permute.xlu0 1
        %1308 = vperm.xlu0 %1307, %v1206
        %v1309 = vpop.permute.xlu0 %1308
        %v1311 = vmul.f32 %v1191, %v1297
        %v1312 = vmul.f32 %v1192, %v1297
        %v1313 = vmul.f32 %v1193, %v1301
        %v1314 = vmul.f32 %v1194, %v1301
        %v1315 = vmul.f32 %v1195, %v1305
        %v1316 = vmul.f32 %v1196, %v1305
        %v1317 = vmul.f32 %v1197, %v1309
        %v1318 = vmul.f32 %v1198, %v1309
        %1327 = vrot.lane.b32.xlu0 %v1311, 4
        %v1328 = vpop.permute.xlu0 %1327
        %1329 = vrot.lane.b32.xlu0 %v1312, 4
        %v1330 = vpop.permute.xlu0 %1329
        %1331 = vrot.lane.b32.xlu0 %v1313, 4
        %v1332 = vpop.permute.xlu0 %1331
        %1333 = vrot.lane.b32.xlu0 %v1314, 4
        %v1334 = vpop.permute.xlu0 %1333
        %1335 = vrot.lane.b32.xlu0 %v1315, 4
        %v1336 = vpop.permute.xlu0 %1335
        %1337 = vrot.lane.b32.xlu0 %v1316, 4
        %v1338 = vpop.permute.xlu0 %1337
        %1339 = vrot.lane.b32.xlu0 %v1317, 4
        %v1340 = vpop.permute.xlu0 %1339
        %1341 = vrot.lane.b32.xlu0 %v1318, 4
        %v1342 = vpop.permute.xlu0 %1341
        %v1351 = vadd.f32 %v1287, %v1328
        %v1352 = vadd.f32 %v1288, %v1330
        %v1353 = vadd.f32 %v1289, %v1332
        %v1354 = vadd.f32 %v1290, %v1334
        %v1355 = vadd.f32 %v1291, %v1336
        %v1356 = vadd.f32 %v1292, %v1338
        %v1357 = vadd.f32 %v1293, %v1340
        %v1358 = vadd.f32 %v1294, %v1342
        %1359 = vset.pattern.permute.xlu0 2
        %1360 = vperm.xlu0 %1359, %v1203
        %v1361 = vpop.permute.xlu0 %1360
        %1363 = vset.pattern.permute.xlu0 2
        %1364 = vperm.xlu0 %1363, %v1204
        %v1365 = vpop.permute.xlu0 %1364
        %1367 = vset.pattern.permute.xlu0 2
        %1368 = vperm.xlu0 %1367, %v1205
        %v1369 = vpop.permute.xlu0 %1368
        %1371 = vset.pattern.permute.xlu0 2
        %1372 = vperm.xlu0 %1371, %v1206
        %v1373 = vpop.permute.xlu0 %1372
        %v1375 = vmul.f32 %v1191, %v1361
        %v1376 = vmul.f32 %v1192, %v1361
        %v1377 = vmul.f32 %v1193, %v1365
        %v1378 = vmul.f32 %v1194, %v1365
        %v1379 = vmul.f32 %v1195, %v1369
        %v1380 = vmul.f32 %v1196, %v1369
        %v1381 = vmul.f32 %v1197, %v1373
        %v1382 = vmul.f32 %v1198, %v1373
        %1391 = vrot.lane.b32.xlu0 %v1375, 3
        %v1392 = vpop.permute.xlu0 %1391
        %1393 = vrot.lane.b32.xlu0 %v1376, 3
        %v1394 = vpop.permute.xlu0 %1393
        %1395 = vrot.lane.b32.xlu0 %v1377, 3
        %v1396 = vpop.permute.xlu0 %1395
        %1397 = vrot.lane.b32.xlu0 %v1378, 3
        %v1398 = vpop.permute.xlu0 %1397
        %1399 = vrot.lane.b32.xlu0 %v1379, 3
        %v1400 = vpop.permute.xlu0 %1399
        %1401 = vrot.lane.b32.xlu0 %v1380, 3
        %v1402 = vpop.permute.xlu0 %1401
        %1403 = vrot.lane.b32.xlu0 %v1381, 3
        %v1404 = vpop.permute.xlu0 %1403
        %1405 = vrot.lane.b32.xlu0 %v1382, 3
        %v1406 = vpop.permute.xlu0 %1405
        %v1415 = vadd.f32 %v1351, %v1392
        %v1416 = vadd.f32 %v1352, %v1394
        %v1417 = vadd.f32 %v1353, %v1396
        %v1418 = vadd.f32 %v1354, %v1398
        %v1419 = vadd.f32 %v1355, %v1400
        %v1420 = vadd.f32 %v1356, %v1402
        %v1421 = vadd.f32 %v1357, %v1404
        %v1422 = vadd.f32 %v1358, %v1406
        %1423 = vset.pattern.permute.xlu0 3
        %1424 = vperm.xlu0 %1423, %v1203
        %v1425 = vpop.permute.xlu0 %1424
        %1427 = vset.pattern.permute.xlu0 3
        %1428 = vperm.xlu0 %1427, %v1204
        %v1429 = vpop.permute.xlu0 %1428
        %1431 = vset.pattern.permute.xlu0 3
        %1432 = vperm.xlu0 %1431, %v1205
        %v1433 = vpop.permute.xlu0 %1432
        %1435 = vset.pattern.permute.xlu0 3
        %1436 = vperm.xlu0 %1435, %v1206
        %v1437 = vpop.permute.xlu0 %1436
        %v1439 = vmul.f32 %v1191, %v1425
        %v1440 = vmul.f32 %v1192, %v1425
        %v1441 = vmul.f32 %v1193, %v1429
        %v1442 = vmul.f32 %v1194, %v1429
        %v1443 = vmul.f32 %v1195, %v1433
        %v1444 = vmul.f32 %v1196, %v1433
        %v1445 = vmul.f32 %v1197, %v1437
        %v1446 = vmul.f32 %v1198, %v1437
        %1455 = vrot.lane.b32.xlu0 %v1439, 2
        %v1456 = vpop.permute.xlu0 %1455
        %1457 = vrot.lane.b32.xlu0 %v1440, 2
        %v1458 = vpop.permute.xlu0 %1457
        %1459 = vrot.lane.b32.xlu0 %v1441, 2
        %v1460 = vpop.permute.xlu0 %1459
        %1461 = vrot.lane.b32.xlu0 %v1442, 2
        %v1462 = vpop.permute.xlu0 %1461
        %1463 = vrot.lane.b32.xlu0 %v1443, 2
        %v1464 = vpop.permute.xlu0 %1463
        %1465 = vrot.lane.b32.xlu0 %v1444, 2
        %v1466 = vpop.permute.xlu0 %1465
        %1467 = vrot.lane.b32.xlu0 %v1445, 2
        %v1468 = vpop.permute.xlu0 %1467
        %1469 = vrot.lane.b32.xlu0 %v1446, 2
        %v1470 = vpop.permute.xlu0 %1469
        %v1479 = vadd.f32 %v1415, %v1456
        %v1480 = vadd.f32 %v1416, %v1458
        %v1481 = vadd.f32 %v1417, %v1460
        %v1482 = vadd.f32 %v1418, %v1462
        %v1483 = vadd.f32 %v1419, %v1464
        %v1484 = vadd.f32 %v1420, %v1466
        %v1485 = vadd.f32 %v1421, %v1468
        %v1486 = vadd.f32 %v1422, %v1470
        %1487 = vset.pattern.permute.xlu0 4
        %1488 = vperm.xlu0 %1487, %v1203
        %v1489 = vpop.permute.xlu0 %1488
        %1491 = vset.pattern.permute.xlu0 4
        %1492 = vperm.xlu0 %1491, %v1204
        %v1493 = vpop.permute.xlu0 %1492
        %1495 = vset.pattern.permute.xlu0 4
        %1496 = vperm.xlu0 %1495, %v1205
        %v1497 = vpop.permute.xlu0 %1496
        %1499 = vset.pattern.permute.xlu0 4
        %1500 = vperm.xlu0 %1499, %v1206
        %v1501 = vpop.permute.xlu0 %1500
        %v1503 = vmul.f32 %v1191, %v1489
        %v1504 = vmul.f32 %v1192, %v1489
        %v1505 = vmul.f32 %v1193, %v1493
        %v1506 = vmul.f32 %v1194, %v1493
        %v1507 = vmul.f32 %v1195, %v1497
        %v1508 = vmul.f32 %v1196, %v1497
        %v1509 = vmul.f32 %v1197, %v1501
        %v1510 = vmul.f32 %v1198, %v1501
        %1519 = vrot.lane.b32.xlu0 %v1503, 1
        %v1520 = vpop.permute.xlu0 %1519
        %1521 = vrot.lane.b32.xlu0 %v1504, 1
        %v1522 = vpop.permute.xlu0 %1521
        %1523 = vrot.lane.b32.xlu0 %v1505, 1
        %v1524 = vpop.permute.xlu0 %1523
        %1525 = vrot.lane.b32.xlu0 %v1506, 1
        %v1526 = vpop.permute.xlu0 %1525
        %1527 = vrot.lane.b32.xlu0 %v1507, 1
        %v1528 = vpop.permute.xlu0 %1527
        %1529 = vrot.lane.b32.xlu0 %v1508, 1
        %v1530 = vpop.permute.xlu0 %1529
        %1531 = vrot.lane.b32.xlu0 %v1509, 1
        %v1532 = vpop.permute.xlu0 %1531
        %1533 = vrot.lane.b32.xlu0 %v1510, 1
        %v1534 = vpop.permute.xlu0 %1533
        %v1543 = vadd.f32 %v1479, %v1520
        %v1544 = vadd.f32 %v1480, %v1522
        %v1545 = vadd.f32 %v1481, %v1524
        %v1546 = vadd.f32 %v1482, %v1526
        %v1547 = vadd.f32 %v1483, %v1528
        %v1548 = vadd.f32 %v1484, %v1530
        %v1549 = vadd.f32 %v1485, %v1532
        %v1550 = vadd.f32 %v1486, %v1534
        %1551 = vset.pattern.permute.xlu0 6
        %1552 = vperm.xlu0 %1551, %v1203
        %v1553 = vpop.permute.xlu0 %1552
        %1555 = vset.pattern.permute.xlu0 6
        %1556 = vperm.xlu0 %1555, %v1204
        %v1557 = vpop.permute.xlu0 %1556
        %1559 = vset.pattern.permute.xlu0 6
        %1560 = vperm.xlu0 %1559, %v1205
        %v1561 = vpop.permute.xlu0 %1560
        %1563 = vset.pattern.permute.xlu0 6
        %1564 = vperm.xlu0 %1563, %v1206
        %v1565 = vpop.permute.xlu0 %1564
        %v1567 = vmul.f32 %v1191, %v1553
        %v1568 = vmul.f32 %v1192, %v1553
        %v1569 = vmul.f32 %v1193, %v1557
        %v1570 = vmul.f32 %v1194, %v1557
        %v1571 = vmul.f32 %v1195, %v1561
        %v1572 = vmul.f32 %v1196, %v1561
        %v1573 = vmul.f32 %v1197, %v1565
        %v1574 = vmul.f32 %v1198, %v1565
        %1583 = vrot.lane.b32.xlu0 %v1567, 127
        %v1584 = vpop.permute.xlu0 %1583
        %1585 = vrot.lane.b32.xlu0 %v1568, 127
        %v1586 = vpop.permute.xlu0 %1585
        %1587 = vrot.lane.b32.xlu0 %v1569, 127
        %v1588 = vpop.permute.xlu0 %1587
        %1589 = vrot.lane.b32.xlu0 %v1570, 127
        %v1590 = vpop.permute.xlu0 %1589
        %1591 = vrot.lane.b32.xlu0 %v1571, 127
        %v1592 = vpop.permute.xlu0 %1591
        %1593 = vrot.lane.b32.xlu0 %v1572, 127
        %v1594 = vpop.permute.xlu0 %1593
        %1595 = vrot.lane.b32.xlu0 %v1573, 127
        %v1596 = vpop.permute.xlu0 %1595
        %1597 = vrot.lane.b32.xlu0 %v1574, 127
        %v1598 = vpop.permute.xlu0 %1597
        %v1607 = vadd.f32 %v1543, %v1584
        %v1608 = vadd.f32 %v1544, %v1586
        %v1609 = vadd.f32 %v1545, %v1588
        %v1610 = vadd.f32 %v1546, %v1590
        %v1611 = vadd.f32 %v1547, %v1592
        %v1612 = vadd.f32 %v1548, %v1594
        %v1613 = vadd.f32 %v1549, %v1596
        %v1614 = vadd.f32 %v1550, %v1598
        %1615 = vset.pattern.permute.xlu0 7
        %1616 = vperm.xlu0 %1615, %v1203
        %v1617 = vpop.permute.xlu0 %1616
        %1619 = vset.pattern.permute.xlu0 7
        %1620 = vperm.xlu0 %1619, %v1204
        %v1621 = vpop.permute.xlu0 %1620
        %1623 = vset.pattern.permute.xlu0 7
        %1624 = vperm.xlu0 %1623, %v1205
        %v1625 = vpop.permute.xlu0 %1624
        %1627 = vset.pattern.permute.xlu0 7
        %1628 = vperm.xlu0 %1627, %v1206
        %v1629 = vpop.permute.xlu0 %1628
        %v1631 = vmul.f32 %v1191, %v1617
        %v1632 = vmul.f32 %v1192, %v1617
        %v1633 = vmul.f32 %v1193, %v1621
        %v1634 = vmul.f32 %v1194, %v1621
        %v1635 = vmul.f32 %v1195, %v1625
        %v1636 = vmul.f32 %v1196, %v1625
        %v1637 = vmul.f32 %v1197, %v1629
        %v1638 = vmul.f32 %v1198, %v1629
        %1647 = vrot.lane.b32.xlu0 %v1631, 126
        %v1648 = vpop.permute.xlu0 %1647
        %1649 = vrot.lane.b32.xlu0 %v1632, 126
        %v1650 = vpop.permute.xlu0 %1649
        %1651 = vrot.lane.b32.xlu0 %v1633, 126
        %v1652 = vpop.permute.xlu0 %1651
        %1653 = vrot.lane.b32.xlu0 %v1634, 126
        %v1654 = vpop.permute.xlu0 %1653
        %1655 = vrot.lane.b32.xlu0 %v1635, 126
        %v1656 = vpop.permute.xlu0 %1655
        %1657 = vrot.lane.b32.xlu0 %v1636, 126
        %v1658 = vpop.permute.xlu0 %1657
        %1659 = vrot.lane.b32.xlu0 %v1637, 126
        %v1660 = vpop.permute.xlu0 %1659
        %1661 = vrot.lane.b32.xlu0 %v1638, 126
        %v1662 = vpop.permute.xlu0 %1661
        %v1671 = vadd.f32 %v1607, %v1648
        %v1672 = vadd.f32 %v1608, %v1650
        %v1673 = vadd.f32 %v1609, %v1652
        %v1674 = vadd.f32 %v1610, %v1654
        %v1675 = vadd.f32 %v1611, %v1656
        %v1676 = vadd.f32 %v1612, %v1658
        %v1677 = vadd.f32 %v1613, %v1660
        %v1678 = vadd.f32 %v1614, %v1662
        %1679 = vset.pattern.permute.xlu0 8
        %1680 = vperm.xlu0 %1679, %v1203
        %v1681 = vpop.permute.xlu0 %1680
        %1683 = vset.pattern.permute.xlu0 8
        %1684 = vperm.xlu0 %1683, %v1204
        %v1685 = vpop.permute.xlu0 %1684
        %1687 = vset.pattern.permute.xlu0 8
        %1688 = vperm.xlu0 %1687, %v1205
        %v1689 = vpop.permute.xlu0 %1688
        %1691 = vset.pattern.permute.xlu0 8
        %1692 = vperm.xlu0 %1691, %v1206
        %v1693 = vpop.permute.xlu0 %1692
        %v1695 = vmul.f32 %v1191, %v1681
        %v1696 = vmul.f32 %v1192, %v1681
        %v1697 = vmul.f32 %v1193, %v1685
        %v1698 = vmul.f32 %v1194, %v1685
        %v1699 = vmul.f32 %v1195, %v1689
        %v1700 = vmul.f32 %v1196, %v1689
        %v1701 = vmul.f32 %v1197, %v1693
        %v1702 = vmul.f32 %v1198, %v1693
        %1711 = vrot.lane.b32.xlu0 %v1695, 125
        %v1712 = vpop.permute.xlu0 %1711
        %1713 = vrot.lane.b32.xlu0 %v1696, 125
        %v1714 = vpop.permute.xlu0 %1713
        %1715 = vrot.lane.b32.xlu0 %v1697, 125
        %v1716 = vpop.permute.xlu0 %1715
        %1717 = vrot.lane.b32.xlu0 %v1698, 125
        %v1718 = vpop.permute.xlu0 %1717
        %1719 = vrot.lane.b32.xlu0 %v1699, 125
        %v1720 = vpop.permute.xlu0 %1719
        %1721 = vrot.lane.b32.xlu0 %v1700, 125
        %v1722 = vpop.permute.xlu0 %1721
        %1723 = vrot.lane.b32.xlu0 %v1701, 125
        %v1724 = vpop.permute.xlu0 %1723
        %1725 = vrot.lane.b32.xlu0 %v1702, 125
        %v1726 = vpop.permute.xlu0 %1725
        %v1735 = vadd.f32 %v1671, %v1712
        %v1736 = vadd.f32 %v1672, %v1714
        %v1737 = vadd.f32 %v1673, %v1716
        %v1738 = vadd.f32 %v1674, %v1718
        %v1739 = vadd.f32 %v1675, %v1720
        %v1740 = vadd.f32 %v1676, %v1722
        %v1741 = vadd.f32 %v1677, %v1724
        %v1742 = vadd.f32 %v1678, %v1726
        %1743 = vset.pattern.permute.xlu0 9
        %1744 = vperm.xlu0 %1743, %v1203
        %v1745 = vpop.permute.xlu0 %1744
        %1747 = vset.pattern.permute.xlu0 9
        %1748 = vperm.xlu0 %1747, %v1204
        %v1749 = vpop.permute.xlu0 %1748
        %1751 = vset.pattern.permute.xlu0 9
        %1752 = vperm.xlu0 %1751, %v1205
        %v1753 = vpop.permute.xlu0 %1752
        %1755 = vset.pattern.permute.xlu0 9
        %1756 = vperm.xlu0 %1755, %v1206
        %v1757 = vpop.permute.xlu0 %1756
        %v1759 = vmul.f32 %v1191, %v1745
        %v1760 = vmul.f32 %v1192, %v1745
        %v1761 = vmul.f32 %v1193, %v1749
        %v1762 = vmul.f32 %v1194, %v1749
        %v1763 = vmul.f32 %v1195, %v1753
        %v1764 = vmul.f32 %v1196, %v1753
        %v1765 = vmul.f32 %v1197, %v1757
        %v1766 = vmul.f32 %v1198, %v1757
        %1775 = vrot.lane.b32.xlu0 %v1759, 124
        %v1776 = vpop.permute.xlu0 %1775
        %1777 = vrot.lane.b32.xlu0 %v1760, 124
        %v1778 = vpop.permute.xlu0 %1777
        %1779 = vrot.lane.b32.xlu0 %v1761, 124
        %v1780 = vpop.permute.xlu0 %1779
        %1781 = vrot.lane.b32.xlu0 %v1762, 124
        %v1782 = vpop.permute.xlu0 %1781
        %1783 = vrot.lane.b32.xlu0 %v1763, 124
        %v1784 = vpop.permute.xlu0 %1783
        %1785 = vrot.lane.b32.xlu0 %v1764, 124
        %v1786 = vpop.permute.xlu0 %1785
        %1787 = vrot.lane.b32.xlu0 %v1765, 124
        %v1788 = vpop.permute.xlu0 %1787
        %1789 = vrot.lane.b32.xlu0 %v1766, 124
        %v1790 = vpop.permute.xlu0 %1789
        %v1799 = vadd.f32 %v1735, %v1776
        %v1800 = vadd.f32 %v1736, %v1778
        %v1801 = vadd.f32 %v1737, %v1780
        %v1802 = vadd.f32 %v1738, %v1782
        %v1803 = vadd.f32 %v1739, %v1784
        %v1804 = vadd.f32 %v1740, %v1786
        %v1805 = vadd.f32 %v1741, %v1788
        %v1806 = vadd.f32 %v1742, %v1790
        %1807 = vset.pattern.permute.xlu0 10
        %1808 = vperm.xlu0 %1807, %v1203
        %v1809 = vpop.permute.xlu0 %1808
        %1811 = vset.pattern.permute.xlu0 10
        %1812 = vperm.xlu0 %1811, %v1204
        %v1813 = vpop.permute.xlu0 %1812
        %1815 = vset.pattern.permute.xlu0 10
        %1816 = vperm.xlu0 %1815, %v1205
        %v1817 = vpop.permute.xlu0 %1816
        %1819 = vset.pattern.permute.xlu0 10
        %1820 = vperm.xlu0 %1819, %v1206
        %v1821 = vpop.permute.xlu0 %1820
        %v1823 = vmul.f32 %v1191, %v1809
        %v1824 = vmul.f32 %v1192, %v1809
        %v1825 = vmul.f32 %v1193, %v1813
        %v1826 = vmul.f32 %v1194, %v1813
        %v1827 = vmul.f32 %v1195, %v1817
        %v1828 = vmul.f32 %v1196, %v1817
        %v1829 = vmul.f32 %v1197, %v1821
        %v1830 = vmul.f32 %v1198, %v1821
        %1839 = vrot.lane.b32.xlu0 %v1823, 123
        %v1840 = vpop.permute.xlu0 %1839
        %1841 = vrot.lane.b32.xlu0 %v1824, 123
        %v1842 = vpop.permute.xlu0 %1841
        %1843 = vrot.lane.b32.xlu0 %v1825, 123
        %v1844 = vpop.permute.xlu0 %1843
        %1845 = vrot.lane.b32.xlu0 %v1826, 123
        %v1846 = vpop.permute.xlu0 %1845
        %1847 = vrot.lane.b32.xlu0 %v1827, 123
        %v1848 = vpop.permute.xlu0 %1847
        %1849 = vrot.lane.b32.xlu0 %v1828, 123
        %v1850 = vpop.permute.xlu0 %1849
        %1851 = vrot.lane.b32.xlu0 %v1829, 123
        %v1852 = vpop.permute.xlu0 %1851
        %1853 = vrot.lane.b32.xlu0 %v1830, 123
        %v1854 = vpop.permute.xlu0 %1853
        %v1863 = vadd.f32 %v1799, %v1840
        %v1864 = vadd.f32 %v1800, %v1842
        %v1865 = vadd.f32 %v1801, %v1844
        %v1866 = vadd.f32 %v1802, %v1846
        %v1867 = vadd.f32 %v1803, %v1848
        %v1868 = vadd.f32 %v1804, %v1850
        %v1869 = vadd.f32 %v1805, %v1852
        %v1870 = vadd.f32 %v1806, %v1854
        %v1871 = vld [vmem:[%s4] sm:$0x1]
        %v1872 = vld [vmem:[%s4 + $0x1] sm:$0x1]
        %v1873 = vld [vmem:[%s4 + $0x2] sm:$0x1]
        %v1874 = vld [vmem:[%s4 + $0x3] sm:$0x1]
        %v1879 = vperm.slane %v1871, 0
        %v1880 = vperm.slane %v1872, 0
        %v1881 = vperm.slane %v1873, 0
        %v1882 = vperm.slane %v1874, 0
        %1883 = vset.pattern.permute.xlu0 0
        %1884 = vperm.xlu0 %1883, %v1879
        %v1885 = vpop.permute.xlu0 %1884
        %1887 = vset.pattern.permute.xlu0 0
        %1888 = vperm.xlu0 %1887, %v1880
        %v1889 = vpop.permute.xlu0 %1888
        %1891 = vset.pattern.permute.xlu0 0
        %1892 = vperm.xlu0 %1891, %v1881
        %v1893 = vpop.permute.xlu0 %1892
        %1895 = vset.pattern.permute.xlu0 0
        %1896 = vperm.xlu0 %1895, %v1882
        %v1897 = vpop.permute.xlu0 %1896
        %v1899 = vadd.f32 %v1863, %v1885
        %v1900 = vadd.f32 %v1864, %v1885
        %v1901 = vadd.f32 %v1865, %v1889
        %v1902 = vadd.f32 %v1866, %v1889
        %v1903 = vadd.f32 %v1867, %v1893
        %v1904 = vadd.f32 %v1868, %v1893
        %v1905 = vadd.f32 %v1869, %v1897
        %v1906 = vadd.f32 %v1870, %v1897
        %1915 = vrot.lane.b32.xlu0 %v1899, 123
        %v1916 = vpop.permute.xlu0 %1915
        %1917 = vrot.lane.b32.xlu0 %v1900, 123
        %v1918 = vpop.permute.xlu0 %1917
        %1919 = vrot.lane.b32.xlu0 %v1901, 123
        %v1920 = vpop.permute.xlu0 %1919
        %1921 = vrot.lane.b32.xlu0 %v1902, 123
        %v1922 = vpop.permute.xlu0 %1921
        %1923 = vrot.lane.b32.xlu0 %v1903, 123
        %v1924 = vpop.permute.xlu0 %1923
        %1925 = vrot.lane.b32.xlu0 %v1904, 123
        %v1926 = vpop.permute.xlu0 %1925
        %1927 = vrot.lane.b32.xlu0 %v1905, 123
        %v1928 = vpop.permute.xlu0 %1927
        %1929 = vrot.lane.b32.xlu0 %v1906, 123
        %v1930 = vpop.permute.xlu0 %1929
        %s1939 = scalar_lea.vmem %s312, 384 [#allocation8]
        %1940 = vst.msk [vmem:[%s1939] sm:$0xff] %vm356, %v1916
        %1941 = vst.msk [vmem:[%s1939 + $0x8] sm:$0xff] %vm356, %v1918
        %1942 = vst.msk [vmem:[%s1939 + $0x10] sm:$0xff] %vm356, %v1920
        %1943 = vst.msk [vmem:[%s1939 + $0x18] sm:$0xff] %vm356, %v1922
        %1944 = vst.msk [vmem:[%s1939 + $0x20] sm:$0xff] %vm356, %v1924
        %1945 = vst.msk [vmem:[%s1939 + $0x28] sm:$0xff] %vm356, %v1926
        %1946 = vst.msk [vmem:[%s1939 + $0x30] sm:$0xff] %vm356, %v1928
        %1947 = vst.msk [vmem:[%s1939 + $0x38] sm:$0xff] %vm356, %v1930
        %1948 = vst.msk [vmem:[#allocation4] sm:$0xff] %vm356, 0.0
        %1949 = vst.msk [vmem:[#allocation4 + $0x8] sm:$0xff] %vm356, 0.0
        %1950 = vst.msk [vmem:[#allocation4 + $0x10] sm:$0xff] %vm356, 0.0
        %vm1951 = vcmask 254976
        %1952 = vst.msk [vmem:[#allocation4 + $0x18] sm:$0x3] %vm1951, 0.0
        %1953 = vst.msk [vmem:[#allocation4 + $0x20] sm:$0xff] %vm356, 0.0
        %1954 = vst.msk [vmem:[#allocation4 + $0x28] sm:$0xff] %vm356, 0.0
        %1955 = vst.msk [vmem:[#allocation4 + $0x30] sm:$0xff] %vm356, 0.0
        %1956 = vst.msk [vmem:[#allocation4 + $0x38] sm:$0x3] %vm1951, 0.0
        %1957 = vst.msk [vmem:[#allocation4 + $0x40] sm:$0xff] %vm356, 0.0
        %1958 = vst.msk [vmem:[#allocation4 + $0x48] sm:$0xff] %vm356, 0.0
        %1959 = vst.msk [vmem:[#allocation4 + $0x50] sm:$0xff] %vm356, 0.0
        %1960 = vst.msk [vmem:[#allocation4 + $0x58] sm:$0x3] %vm1951, 0.0
        %1961 = vst.msk [vmem:[#allocation4 + $0x60] sm:$0xff] %vm356, 0.0
        %1962 = vst.msk [vmem:[#allocation4 + $0x68] sm:$0xff] %vm356, 0.0
        %1963 = vst.msk [vmem:[#allocation4 + $0x70] sm:$0xff] %vm356, 0.0
        %1964 = vst.msk [vmem:[#allocation4 + $0x78] sm:$0x3] %vm1951, 0.0
        %s1965 = sadd.s32 %s314, 896
        %s1966 = scalar_lea.vmem %s281, %s1965 [#allocation5]
        %v1967 = vld [vmem:[%s1966] sm:$0xff]
        %v1968 = vld [vmem:[%s1966 + $0x8] sm:$0xff]
        %v1969 = vld [vmem:[%s1966 + $0x20] sm:$0xff]
        %v1970 = vld [vmem:[%s1966 + $0x28] sm:$0xff]
        %v1971 = vld [vmem:[%s1966 + $0x40] sm:$0xff]
        %v1972 = vld [vmem:[%s1966 + $0x48] sm:$0xff]
        %v1973 = vld [vmem:[%s1966 + $0x60] sm:$0xff]
        %v1974 = vld [vmem:[%s1966 + $0x68] sm:$0xff]
        %1975 = vst.msk [vmem:[#allocation4 + $0x5] sm:$0xff] %vm356, %v1967
        %1976 = vst.msk [vmem:[#allocation4 + $0xd] sm:$0xff] %vm356, %v1968
        %1977 = vst.msk [vmem:[#allocation4 + $0x25] sm:$0xff] %vm356, %v1969
        %1978 = vst.msk [vmem:[#allocation4 + $0x2d] sm:$0xff] %vm356, %v1970
        %1979 = vst.msk [vmem:[#allocation4 + $0x45] sm:$0xff] %vm356, %v1971
        %1980 = vst.msk [vmem:[#allocation4 + $0x4d] sm:$0xff] %vm356, %v1972
        %1981 = vst.msk [vmem:[#allocation4 + $0x65] sm:$0xff] %vm356, %v1973
        %1982 = vst.msk [vmem:[#allocation4 + $0x6d] sm:$0xff] %vm356, %v1974
        // Predicated region
        $region61: #{tpu_custom_call.1} parent=47 // pred_check
          %p1983 = pneg %p462
        $region62: #{tpu_custom_call.1} parent=47 // pred_check_branch
          %1985 = sbr.rel (%p1983) target = $region64
        $region63: #{tpu_custom_call.1} parent=47 // pred_region
          %s1986 = ssub.s32 %s314, 5
          %s1987 = sadd.s32 %s1986, 896
          %s1988 = scalar_lea.vmem %s281, %s1987 [#allocation5]
          %v1989 = vld [vmem:[%s1988] sm:$0x1f]
          %v1990 = vld [vmem:[%s1988 + $0x20] sm:$0x1f]
          %v1991 = vld [vmem:[%s1988 + $0x40] sm:$0x1f]
          %v1992 = vld [vmem:[%s1988 + $0x60] sm:$0x1f]
          %vm1993 = vcmask 258048
          %1994 = vst.msk [vmem:[#allocation4] sm:$0x1f] %vm1993, %v1989
          %1995 = vst.msk [vmem:[#allocation4 + $0x20] sm:$0x1f] %vm1993, %v1990
          %1996 = vst.msk [vmem:[#allocation4 + $0x40] sm:$0x1f] %vm1993, %v1991
          %1997 = vst.msk [vmem:[#allocation4 + $0x60] sm:$0x1f] %vm1993, %v1992
        $region64: #{tpu_custom_call.1} parent=47 // pred_fallthru
          _
        // Predicated region
        $region65: #{tpu_custom_call.1} parent=47 // pred_check
          %p1998 = pneg %p494
        $region66: #{tpu_custom_call.1} parent=47 // pred_check_branch
          %2000 = sbr.rel (%p1998) target = $region68
        $region67: #{tpu_custom_call.1} parent=47 // pred_region
          %s2001 = sadd.s32 %s314, 16
          %s2002 = sadd.s32 %s2001, 896
          %s2003 = scalar_lea.vmem %s281, %s2002 [#allocation5]
          %v2004 = vld [vmem:[%s2003] sm:$0x1f]
          %v2005 = vld [vmem:[%s2003 + $0x20] sm:$0x1f]
          %v2006 = vld [vmem:[%s2003 + $0x40] sm:$0x1f]
          %v2007 = vld [vmem:[%s2003 + $0x60] sm:$0x1f]
          %vm2008 = vcmask 258048
          %2009 = vst.msk [vmem:[#allocation4 + $0x15] sm:$0x1f] %vm2008, %v2004
          %2010 = vst.msk [vmem:[#allocation4 + $0x35] sm:$0x1f] %vm2008, %v2005
          %2011 = vst.msk [vmem:[#allocation4 + $0x55] sm:$0x1f] %vm2008, %v2006
          %2012 = vst.msk [vmem:[#allocation4 + $0x75] sm:$0x1f] %vm2008, %v2007
        $region68: #{tpu_custom_call.1} parent=47 // pred_fallthru
          _
        %v2013 = vld [vmem:[%s5] sm:$0xff]
        %v2014 = vld [vmem:[%s5 + $0x8] sm:$0x7]
        %v2015 = vld [vmem:[%s5 + $0x10] sm:$0xff]
        %v2016 = vld [vmem:[%s5 + $0x18] sm:$0x7]
        %v2017 = vld [vmem:[%s5 + $0x20] sm:$0xff]
        %v2018 = vld [vmem:[%s5 + $0x28] sm:$0x7]
        %v2019 = vld [vmem:[%s5 + $0x30] sm:$0xff]
        %v2020 = vld [vmem:[%s5 + $0x38] sm:$0x7]
        %v2021 = vld [vmem:[#allocation4 + $0x5] sm:$0xff]
        %v2022 = vld [vmem:[#allocation4 + $0xd] sm:$0xff]
        %v2023 = vld [vmem:[#allocation4 + $0x25] sm:$0xff]
        %v2024 = vld [vmem:[#allocation4 + $0x2d] sm:$0xff]
        %v2025 = vld [vmem:[#allocation4 + $0x45] sm:$0xff]
        %v2026 = vld [vmem:[#allocation4 + $0x4d] sm:$0xff]
        %v2027 = vld [vmem:[#allocation4 + $0x65] sm:$0xff]
        %v2028 = vld [vmem:[#allocation4 + $0x6d] sm:$0xff]
        %v2033 = vrot.slane %v2013, 5
        %v2034 = vrot.slane %v2015, 5
        %v2035 = vrot.slane %v2017, 5
        %v2036 = vrot.slane %v2019, 5
        %s2037 = vtos %v2033
        %v2038 = vstv %s2037
        %s2040 = vtos %v2034
        %v2041 = vstv %s2040
        %s2043 = vtos %v2035
        %v2044 = vstv %s2043
        %s2046 = vtos %v2036
        %v2047 = vstv %s2046
        %v2049 = vmul.f32 %v2021, %v2038
        %v2050 = vmul.f32 %v2022, %v2038
        %v2051 = vmul.f32 %v2023, %v2041
        %v2052 = vmul.f32 %v2024, %v2041
        %v2053 = vmul.f32 %v2025, %v2044
        %v2054 = vmul.f32 %v2026, %v2044
        %v2055 = vmul.f32 %v2027, %v2047
        %v2056 = vmul.f32 %v2028, %v2047
        %v2057 = vld [vmem:[#allocation4] sm:$0xff]
        %v2058 = vld [vmem:[#allocation4 + $0x8] sm:$0xff]
        %v2059 = vld [vmem:[#allocation4 + $0x20] sm:$0xff]
        %v2060 = vld [vmem:[#allocation4 + $0x28] sm:$0xff]
        %v2061 = vld [vmem:[#allocation4 + $0x40] sm:$0xff]
        %v2062 = vld [vmem:[#allocation4 + $0x48] sm:$0xff]
        %v2063 = vld [vmem:[#allocation4 + $0x60] sm:$0xff]
        %v2064 = vld [vmem:[#allocation4 + $0x68] sm:$0xff]
        %s2065 = vtos %v2013
        %v2066 = vstv %s2065
        %s2068 = vtos %v2015
        %v2069 = vstv %s2068
        %s2071 = vtos %v2017
        %v2072 = vstv %s2071
        %s2074 = vtos %v2019
        %v2075 = vstv %s2074
        %v2077 = vmul.f32 %v2057, %v2066
        %v2078 = vmul.f32 %v2058, %v2066
        %v2079 = vmul.f32 %v2059, %v2069
        %v2080 = vmul.f32 %v2060, %v2069
        %v2081 = vmul.f32 %v2061, %v2072
        %v2082 = vmul.f32 %v2062, %v2072
        %v2083 = vmul.f32 %v2063, %v2075
        %v2084 = vmul.f32 %v2064, %v2075
        %v2085 = vadd.f32 %v2049, %v2077
        %v2086 = vadd.f32 %v2050, %v2078
        %v2087 = vadd.f32 %v2051, %v2079
        %v2088 = vadd.f32 %v2052, %v2080
        %v2089 = vadd.f32 %v2053, %v2081
        %v2090 = vadd.f32 %v2054, %v2082
        %v2091 = vadd.f32 %v2055, %v2083
        %v2092 = vadd.f32 %v2056, %v2084
        %v2093 = vld [vmem:[#allocation4 + $0x1] sm:$0xff]
        %v2094 = vld [vmem:[#allocation4 + $0x9] sm:$0xff]
        %v2095 = vld [vmem:[#allocation4 + $0x21] sm:$0xff]
        %v2096 = vld [vmem:[#allocation4 + $0x29] sm:$0xff]
        %v2097 = vld [vmem:[#allocation4 + $0x41] sm:$0xff]
        %v2098 = vld [vmem:[#allocation4 + $0x49] sm:$0xff]
        %v2099 = vld [vmem:[#allocation4 + $0x61] sm:$0xff]
        %v2100 = vld [vmem:[#allocation4 + $0x69] sm:$0xff]
        %v2101 = vrot.slane %v2013, 1
        %v2102 = vrot.slane %v2015, 1
        %v2103 = vrot.slane %v2017, 1
        %v2104 = vrot.slane %v2019, 1
        %s2105 = vtos %v2101
        %v2106 = vstv %s2105
        %s2108 = vtos %v2102
        %v2109 = vstv %s2108
        %s2111 = vtos %v2103
        %v2112 = vstv %s2111
        %s2114 = vtos %v2104
        %v2115 = vstv %s2114
        %v2117 = vmul.f32 %v2093, %v2106
        %v2118 = vmul.f32 %v2094, %v2106
        %v2119 = vmul.f32 %v2095, %v2109
        %v2120 = vmul.f32 %v2096, %v2109
        %v2121 = vmul.f32 %v2097, %v2112
        %v2122 = vmul.f32 %v2098, %v2112
        %v2123 = vmul.f32 %v2099, %v2115
        %v2124 = vmul.f32 %v2100, %v2115
        %v2125 = vadd.f32 %v2085, %v2117
        %v2126 = vadd.f32 %v2086, %v2118
        %v2127 = vadd.f32 %v2087, %v2119
        %v2128 = vadd.f32 %v2088, %v2120
        %v2129 = vadd.f32 %v2089, %v2121
        %v2130 = vadd.f32 %v2090, %v2122
        %v2131 = vadd.f32 %v2091, %v2123
        %v2132 = vadd.f32 %v2092, %v2124
        %v2133 = vld [vmem:[#allocation4 + $0x2] sm:$0xff]
        %v2134 = vld [vmem:[#allocation4 + $0xa] sm:$0xff]
        %v2135 = vld [vmem:[#allocation4 + $0x22] sm:$0xff]
        %v2136 = vld [vmem:[#allocation4 + $0x2a] sm:$0xff]
        %v2137 = vld [vmem:[#allocation4 + $0x42] sm:$0xff]
        %v2138 = vld [vmem:[#allocation4 + $0x4a] sm:$0xff]
        %v2139 = vld [vmem:[#allocation4 + $0x62] sm:$0xff]
        %v2140 = vld [vmem:[#allocation4 + $0x6a] sm:$0xff]
        %v2141 = vrot.slane %v2013, 2
        %v2142 = vrot.slane %v2015, 2
        %v2143 = vrot.slane %v2017, 2
        %v2144 = vrot.slane %v2019, 2
        %s2145 = vtos %v2141
        %v2146 = vstv %s2145
        %s2148 = vtos %v2142
        %v2149 = vstv %s2148
        %s2151 = vtos %v2143
        %v2152 = vstv %s2151
        %s2154 = vtos %v2144
        %v2155 = vstv %s2154
        %v2157 = vmul.f32 %v2133, %v2146
        %v2158 = vmul.f32 %v2134, %v2146
        %v2159 = vmul.f32 %v2135, %v2149
        %v2160 = vmul.f32 %v2136, %v2149
        %v2161 = vmul.f32 %v2137, %v2152
        %v2162 = vmul.f32 %v2138, %v2152
        %v2163 = vmul.f32 %v2139, %v2155
        %v2164 = vmul.f32 %v2140, %v2155
        %v2165 = vadd.f32 %v2125, %v2157
        %v2166 = vadd.f32 %v2126, %v2158
        %v2167 = vadd.f32 %v2127, %v2159
        %v2168 = vadd.f32 %v2128, %v2160
        %v2169 = vadd.f32 %v2129, %v2161
        %v2170 = vadd.f32 %v2130, %v2162
        %v2171 = vadd.f32 %v2131, %v2163
        %v2172 = vadd.f32 %v2132, %v2164
        %v2173 = vld [vmem:[#allocation4 + $0x3] sm:$0xff]
        %v2174 = vld [vmem:[#allocation4 + $0xb] sm:$0xff]
        %v2175 = vld [vmem:[#allocation4 + $0x23] sm:$0xff]
        %v2176 = vld [vmem:[#allocation4 + $0x2b] sm:$0xff]
        %v2177 = vld [vmem:[#allocation4 + $0x43] sm:$0xff]
        %v2178 = vld [vmem:[#allocation4 + $0x4b] sm:$0xff]
        %v2179 = vld [vmem:[#allocation4 + $0x63] sm:$0xff]
        %v2180 = vld [vmem:[#allocation4 + $0x6b] sm:$0xff]
        %v2181 = vrot.slane %v2013, 3
        %v2182 = vrot.slane %v2015, 3
        %v2183 = vrot.slane %v2017, 3
        %v2184 = vrot.slane %v2019, 3
        %s2185 = vtos %v2181
        %v2186 = vstv %s2185
        %s2188 = vtos %v2182
        %v2189 = vstv %s2188
        %s2191 = vtos %v2183
        %v2192 = vstv %s2191
        %s2194 = vtos %v2184
        %v2195 = vstv %s2194
        %v2197 = vmul.f32 %v2173, %v2186
        %v2198 = vmul.f32 %v2174, %v2186
        %v2199 = vmul.f32 %v2175, %v2189
        %v2200 = vmul.f32 %v2176, %v2189
        %v2201 = vmul.f32 %v2177, %v2192
        %v2202 = vmul.f32 %v2178, %v2192
        %v2203 = vmul.f32 %v2179, %v2195
        %v2204 = vmul.f32 %v2180, %v2195
        %v2205 = vadd.f32 %v2165, %v2197
        %v2206 = vadd.f32 %v2166, %v2198
        %v2207 = vadd.f32 %v2167, %v2199
        %v2208 = vadd.f32 %v2168, %v2200
        %v2209 = vadd.f32 %v2169, %v2201
        %v2210 = vadd.f32 %v2170, %v2202
        %v2211 = vadd.f32 %v2171, %v2203
        %v2212 = vadd.f32 %v2172, %v2204
        %v2213 = vld [vmem:[#allocation4 + $0x4] sm:$0xff]
        %v2214 = vld [vmem:[#allocation4 + $0xc] sm:$0xff]
        %v2215 = vld [vmem:[#allocation4 + $0x24] sm:$0xff]
        %v2216 = vld [vmem:[#allocation4 + $0x2c] sm:$0xff]
        %v2217 = vld [vmem:[#allocation4 + $0x44] sm:$0xff]
        %v2218 = vld [vmem:[#allocation4 + $0x4c] sm:$0xff]
        %v2219 = vld [vmem:[#allocation4 + $0x64] sm:$0xff]
        %v2220 = vld [vmem:[#allocation4 + $0x6c] sm:$0xff]
        %v2221 = vrot.slane %v2013, 4
        %v2222 = vrot.slane %v2015, 4
        %v2223 = vrot.slane %v2017, 4
        %v2224 = vrot.slane %v2019, 4
        %s2225 = vtos %v2221
        %v2226 = vstv %s2225
        %s2228 = vtos %v2222
        %v2229 = vstv %s2228
        %s2231 = vtos %v2223
        %v2232 = vstv %s2231
        %s2234 = vtos %v2224
        %v2235 = vstv %s2234
        %v2237 = vmul.f32 %v2213, %v2226
        %v2238 = vmul.f32 %v2214, %v2226
        %v2239 = vmul.f32 %v2215, %v2229
        %v2240 = vmul.f32 %v2216, %v2229
        %v2241 = vmul.f32 %v2217, %v2232
        %v2242 = vmul.f32 %v2218, %v2232
        %v2243 = vmul.f32 %v2219, %v2235
        %v2244 = vmul.f32 %v2220, %v2235
        %v2245 = vadd.f32 %v2205, %v2237
        %v2246 = vadd.f32 %v2206, %v2238
        %v2247 = vadd.f32 %v2207, %v2239
        %v2248 = vadd.f32 %v2208, %v2240
        %v2249 = vadd.f32 %v2209, %v2241
        %v2250 = vadd.f32 %v2210, %v2242
        %v2251 = vadd.f32 %v2211, %v2243
        %v2252 = vadd.f32 %v2212, %v2244
        %v2253 = vld [vmem:[#allocation4 + $0x6] sm:$0xff]
        %v2254 = vld [vmem:[#allocation4 + $0xe] sm:$0xff]
        %v2255 = vld [vmem:[#allocation4 + $0x26] sm:$0xff]
        %v2256 = vld [vmem:[#allocation4 + $0x2e] sm:$0xff]
        %v2257 = vld [vmem:[#allocation4 + $0x46] sm:$0xff]
        %v2258 = vld [vmem:[#allocation4 + $0x4e] sm:$0xff]
        %v2259 = vld [vmem:[#allocation4 + $0x66] sm:$0xff]
        %v2260 = vld [vmem:[#allocation4 + $0x6e] sm:$0xff]
        %v2261 = vrot.slane %v2013, 6
        %v2262 = vrot.slane %v2015, 6
        %v2263 = vrot.slane %v2017, 6
        %v2264 = vrot.slane %v2019, 6
        %s2265 = vtos %v2261
        %v2266 = vstv %s2265
        %s2268 = vtos %v2262
        %v2269 = vstv %s2268
        %s2271 = vtos %v2263
        %v2272 = vstv %s2271
        %s2274 = vtos %v2264
        %v2275 = vstv %s2274
        %v2277 = vmul.f32 %v2253, %v2266
        %v2278 = vmul.f32 %v2254, %v2266
        %v2279 = vmul.f32 %v2255, %v2269
        %v2280 = vmul.f32 %v2256, %v2269
        %v2281 = vmul.f32 %v2257, %v2272
        %v2282 = vmul.f32 %v2258, %v2272
        %v2283 = vmul.f32 %v2259, %v2275
        %v2284 = vmul.f32 %v2260, %v2275
        %v2285 = vadd.f32 %v2245, %v2277
        %v2286 = vadd.f32 %v2246, %v2278
        %v2287 = vadd.f32 %v2247, %v2279
        %v2288 = vadd.f32 %v2248, %v2280
        %v2289 = vadd.f32 %v2249, %v2281
        %v2290 = vadd.f32 %v2250, %v2282
        %v2291 = vadd.f32 %v2251, %v2283
        %v2292 = vadd.f32 %v2252, %v2284
        %v2293 = vld [vmem:[#allocation4 + $0x7] sm:$0xff]
        %v2294 = vld [vmem:[#allocation4 + $0xf] sm:$0xff]
        %v2295 = vld [vmem:[#allocation4 + $0x27] sm:$0xff]
        %v2296 = vld [vmem:[#allocation4 + $0x2f] sm:$0xff]
        %v2297 = vld [vmem:[#allocation4 + $0x47] sm:$0xff]
        %v2298 = vld [vmem:[#allocation4 + $0x4f] sm:$0xff]
        %v2299 = vld [vmem:[#allocation4 + $0x67] sm:$0xff]
        %v2300 = vld [vmem:[#allocation4 + $0x6f] sm:$0xff]
        %v2301 = vrot.slane %v2013, 7
        %v2302 = vrot.slane %v2015, 7
        %v2303 = vrot.slane %v2017, 7
        %v2304 = vrot.slane %v2019, 7
        %s2305 = vtos %v2301
        %v2306 = vstv %s2305
        %s2308 = vtos %v2302
        %v2309 = vstv %s2308
        %s2311 = vtos %v2303
        %v2312 = vstv %s2311
        %s2314 = vtos %v2304
        %v2315 = vstv %s2314
        %v2317 = vmul.f32 %v2293, %v2306
        %v2318 = vmul.f32 %v2294, %v2306
        %v2319 = vmul.f32 %v2295, %v2309
        %v2320 = vmul.f32 %v2296, %v2309
        %v2321 = vmul.f32 %v2297, %v2312
        %v2322 = vmul.f32 %v2298, %v2312
        %v2323 = vmul.f32 %v2299, %v2315
        %v2324 = vmul.f32 %v2300, %v2315
        %v2325 = vadd.f32 %v2285, %v2317
        %v2326 = vadd.f32 %v2286, %v2318
        %v2327 = vadd.f32 %v2287, %v2319
        %v2328 = vadd.f32 %v2288, %v2320
        %v2329 = vadd.f32 %v2289, %v2321
        %v2330 = vadd.f32 %v2290, %v2322
        %v2331 = vadd.f32 %v2291, %v2323
        %v2332 = vadd.f32 %v2292, %v2324
        %v2333 = vld [vmem:[#allocation4 + $0x10] sm:$0xff]
        %v2334 = vld [vmem:[#allocation4 + $0x30] sm:$0xff]
        %v2335 = vld [vmem:[#allocation4 + $0x50] sm:$0xff]
        %v2336 = vld [vmem:[#allocation4 + $0x70] sm:$0xff]
        %s2338 = vtos %v2014
        %v2339 = vstv %s2338
        %s2342 = vtos %v2016
        %v2343 = vstv %s2342
        %s2346 = vtos %v2018
        %v2347 = vstv %s2346
        %s2350 = vtos %v2020
        %v2351 = vstv %s2350
        %v2353 = vmul.f32 %v2058, %v2339
        %v2354 = vmul.f32 %v2333, %v2339
        %v2355 = vmul.f32 %v2060, %v2343
        %v2356 = vmul.f32 %v2334, %v2343
        %v2357 = vmul.f32 %v2062, %v2347
        %v2358 = vmul.f32 %v2335, %v2347
        %v2359 = vmul.f32 %v2064, %v2351
        %v2360 = vmul.f32 %v2336, %v2351
        %v2361 = vadd.f32 %v2325, %v2353
        %v2362 = vadd.f32 %v2326, %v2354
        %v2363 = vadd.f32 %v2327, %v2355
        %v2364 = vadd.f32 %v2328, %v2356
        %v2365 = vadd.f32 %v2329, %v2357
        %v2366 = vadd.f32 %v2330, %v2358
        %v2367 = vadd.f32 %v2331, %v2359
        %v2368 = vadd.f32 %v2332, %v2360
        %v2369 = vld [vmem:[#allocation4 + $0x11] sm:$0xff]
        %v2370 = vld [vmem:[#allocation4 + $0x31] sm:$0xff]
        %v2371 = vld [vmem:[#allocation4 + $0x51] sm:$0xff]
        %v2372 = vld [vmem:[#allocation4 + $0x71] sm:$0xff]
        %v2373 = vrot.slane %v2014, 1
        %v2374 = vrot.slane %v2016, 1
        %v2375 = vrot.slane %v2018, 1
        %v2376 = vrot.slane %v2020, 1
        %s2377 = vtos %v2373
        %v2378 = vstv %s2377
        %s2380 = vtos %v2374
        %v2381 = vstv %s2380
        %s2383 = vtos %v2375
        %v2384 = vstv %s2383
        %s2386 = vtos %v2376
        %v2387 = vstv %s2386
        %v2389 = vmul.f32 %v2094, %v2378
        %v2390 = vmul.f32 %v2369, %v2378
        %v2391 = vmul.f32 %v2096, %v2381
        %v2392 = vmul.f32 %v2370, %v2381
        %v2393 = vmul.f32 %v2098, %v2384
        %v2394 = vmul.f32 %v2371, %v2384
        %v2395 = vmul.f32 %v2100, %v2387
        %v2396 = vmul.f32 %v2372, %v2387
        %v2397 = vadd.f32 %v2361, %v2389
        %v2398 = vadd.f32 %v2362, %v2390
        %v2399 = vadd.f32 %v2363, %v2391
        %v2400 = vadd.f32 %v2364, %v2392
        %v2401 = vadd.f32 %v2365, %v2393
        %v2402 = vadd.f32 %v2366, %v2394
        %v2403 = vadd.f32 %v2367, %v2395
        %v2404 = vadd.f32 %v2368, %v2396
        %v2405 = vld [vmem:[#allocation4 + $0x12] sm:$0xff]
        %v2406 = vld [vmem:[#allocation4 + $0x32] sm:$0xff]
        %v2407 = vld [vmem:[#allocation4 + $0x52] sm:$0xff]
        %v2408 = vld [vmem:[#allocation4 + $0x72] sm:$0xff]
        %v2409 = vrot.slane %v2014, 2
        %v2410 = vrot.slane %v2016, 2
        %v2411 = vrot.slane %v2018, 2
        %v2412 = vrot.slane %v2020, 2
        %s2413 = vtos %v2409
        %v2414 = vstv %s2413
        %s2416 = vtos %v2410
        %v2417 = vstv %s2416
        %s2419 = vtos %v2411
        %v2420 = vstv %s2419
        %s2422 = vtos %v2412
        %v2423 = vstv %s2422
        %v2425 = vmul.f32 %v2134, %v2414
        %v2426 = vmul.f32 %v2405, %v2414
        %v2427 = vmul.f32 %v2136, %v2417
        %v2428 = vmul.f32 %v2406, %v2417
        %v2429 = vmul.f32 %v2138, %v2420
        %v2430 = vmul.f32 %v2407, %v2420
        %v2431 = vmul.f32 %v2140, %v2423
        %v2432 = vmul.f32 %v2408, %v2423
        %v2433 = vadd.f32 %v2397, %v2425
        %v2434 = vadd.f32 %v2398, %v2426
        %v2435 = vadd.f32 %v2399, %v2427
        %v2436 = vadd.f32 %v2400, %v2428
        %v2437 = vadd.f32 %v2401, %v2429
        %v2438 = vadd.f32 %v2402, %v2430
        %v2439 = vadd.f32 %v2403, %v2431
        %v2440 = vadd.f32 %v2404, %v2432
        %v2441 = vld [vmem:[%s6] sm:$0x1]
        %v2442 = vld [vmem:[%s6 + $0x1] sm:$0x1]
        %v2443 = vld [vmem:[%s6 + $0x2] sm:$0x1]
        %v2444 = vld [vmem:[%s6 + $0x3] sm:$0x1]
        %v2449 = vperm.slane %v2441, 0
        %v2450 = vperm.slane %v2442, 0
        %v2451 = vperm.slane %v2443, 0
        %v2452 = vperm.slane %v2444, 0
        %2453 = vset.pattern.permute.xlu0 0
        %2454 = vperm.xlu0 %2453, %v2449
        %v2455 = vpop.permute.xlu0 %2454
        %2457 = vset.pattern.permute.xlu0 0
        %2458 = vperm.xlu0 %2457, %v2450
        %v2459 = vpop.permute.xlu0 %2458
        %2461 = vset.pattern.permute.xlu0 0
        %2462 = vperm.xlu0 %2461, %v2451
        %v2463 = vpop.permute.xlu0 %2462
        %2465 = vset.pattern.permute.xlu0 0
        %2466 = vperm.xlu0 %2465, %v2452
        %v2467 = vpop.permute.xlu0 %2466
        %v2469 = vadd.f32 %v2433, %v2455
        %v2470 = vadd.f32 %v2434, %v2455
        %v2471 = vadd.f32 %v2435, %v2459
        %v2472 = vadd.f32 %v2436, %v2459
        %v2473 = vadd.f32 %v2437, %v2463
        %v2474 = vadd.f32 %v2438, %v2463
        %v2475 = vadd.f32 %v2439, %v2467
        %v2476 = vadd.f32 %v2440, %v2467
        %s2477 = scalar_lea.vmem %s312, 448 [#allocation8]
        %2478 = vst.msk [vmem:[%s2477] sm:$0xff] %vm356, %v2469
        %2479 = vst.msk [vmem:[%s2477 + $0x8] sm:$0xff] %vm356, %v2470
        %2480 = vst.msk [vmem:[%s2477 + $0x10] sm:$0xff] %vm356, %v2471
        %2481 = vst.msk [vmem:[%s2477 + $0x18] sm:$0xff] %vm356, %v2472
        %2482 = vst.msk [vmem:[%s2477 + $0x20] sm:$0xff] %vm356, %v2473
        %2483 = vst.msk [vmem:[%s2477 + $0x28] sm:$0xff] %vm356, %v2474
        %2484 = vst.msk [vmem:[%s2477 + $0x30] sm:$0xff] %vm356, %v2475
        %2485 = vst.msk [vmem:[%s2477 + $0x38] sm:$0xff] %vm356, %v2476
        %s2486 = sand.u32 %s198, 1
        %s2487 = scalar_lea.sflag [#allocation7], %s2486
        %s2488 = sand.u32 %s198, 1
        %s2489 = smul.addr %s2488, 512
        %s2490 = scalar_lea.vmem [#allocation8], %s2489
        // Predicated region
        $region69: #{tpu_custom_call.1} parent=47 // pred_check
          %p2491 = pneg %p208
        $region70: #{tpu_custom_call.1} parent=47 // pred_check_branch
          %2493 = sbr.rel (%p2491) target = $region72
        $region71: #{tpu_custom_call.1} parent=47 // pred_region
          #allocation10 [shape = 'u32[6]{0}', space=smem, size = 0x18, scoped, tag = 'DMA stride descriptor']
          %s2494 = smul.u32 2, %s29
          %2496 = vsyncadd %s2487, 0
          %s2497 = smul.addr %s28, 128
          %s2498 = sadd.s32 %s2494, %s2497
          %s2499 = smul.addr %s2498, 8
          %s2500 = scalar_lea.hbm %s7, %s2499
          %s2502 = sshll.u32 1, 14
          %s2503 = sxor.u32 4294967295, %s2502
          %s2506 = sshll.u32 7, 18
          %s2507 = sxor.u32 4294967295, %s2506
          %s2508 = sand.u32 0, %s2507
          %s2510 = sor.u32 %s2508, 0
          %s2511 = sshll.u32 %s2490, 4
          %s2512 = int_to_ptr.vmem [resolvable:$true] %s2511
          %s2513 = sshll.u32 %s2500, 4
          %s2514 = int_to_ptr.hbm [resolvable:$true] %s2513
          %2520 = sst [smem:[#allocation10]] 256
          %s2521 = scalar_lea.smem [#allocation10], 1
          %2522 = sst [smem:[%s2521]] 512
          %s2523 = scalar_lea.smem [#allocation10], 2
          %2524 = sst [smem:[%s2523]] 2
          %s2525 = scalar_lea.smem [#allocation10], 3
          %2526 = sst [smem:[%s2525]] 128
          %s2527 = scalar_lea.smem [#allocation10], 4
          %2528 = sst [smem:[%s2527]] 128
          %s2529 = scalar_lea.smem [#allocation10], 5
          %2530 = sst [smem:[%s2529]] 8
          %2532 = dma.general %s2512, 8192, %s2514, %s2487, [#allocation9], [#allocation10], %s2510, 0
        $region72: #{tpu_custom_call.1} parent=47 // pred_fallthru
          _
      $region48: #{tpu_custom_call.1} parent=5 // pred_fallthru
        _
      %p2533 = scmp.le.s32.totalorder 2, %s19
      // Predicated region
      $region73: #{tpu_custom_call.1} parent=5 // pred_check
        %p2534 = pneg %p2533
      $region74: #{tpu_custom_call.1} parent=5 // pred_check_branch
        %2536 = sbr.rel (%p2534) target = $region76
      $region75: #{tpu_custom_call.1} parent=5 // pred_region
        %s2537 = ssub.s32 %s19, 2
        // Predicated region
        $region77: #{tpu_custom_call.1} parent=75 // pred_check
          %p2538 = pneg %p214
        $region78: #{tpu_custom_call.1} parent=75 // pred_check_branch
          %2540 = sbr.rel (%p2538) target = $region80
        $region79: #{tpu_custom_call.1} parent=75 // pred_region
          %s2541 = sand.u32 %s199, 1
          %s2542 = scalar_lea.sflag [#allocation7], %s2541
          %s2543 = sand.u32 %s199, 1
          %s2544 = smul.addr %s2543, 512
          %s2545 = scalar_lea.vmem [#allocation8], %s2544
          %2547 = dma.done %s2542, 8192
        $region80: #{tpu_custom_call.1} parent=75 // pred_fallthru
          _
      $region76: #{tpu_custom_call.1} parent=5 // pred_fallthru
        _
    $region6: #{tpu_custom_call.1} parent=1 // loop_footer
      %s23 = sadd.s32 1, %s19
    $region7: #{tpu_custom_call.1} parent=1 // loop_footer_branch
      %18 = sbr.rel target = $region3
    $region8: #{tpu_custom_call.1} parent=1 // loop_exit
      _
    %2548 = vsyncpa [#allocation6], 1
    %s2549 = scalar_lea.sflag [#allocation6], 1
    %2550 = vsyncpa %s2549, 1
    %2551 = vsyncpa [#allocation7], 1
    %s2552 = scalar_lea.sflag [#allocation7], 1
    %2553 = vsyncpa %s2552, 1

</llo_original>
